<compile_context>
chip_gen: v7x
topology: tpu7x:2x2x1
jax: 0.10.0
libtpu: 0.0.40
codegen_flags: <defaults>
</compile_context>

<pallas_src>
import functools
import math

import jax
import jax.numpy as jnp
from jax import lax
from jax.experimental import pallas as pl
from jax.experimental.pallas import tpu as pltpu

B = 2
L = 8
N_EMBD = 32
N_HEAD = 4
HEAD = N_EMBD // N_HEAD
MAX_LEN = 16
LN_EPS = 1e-5
BL = B * L
NEG_INF = -1e30

# Fused weight-slab column layout (LN1 affine and 1/sqrt(HEAD) pre-folded):
#   [  0: 32)  Wq_all                      (head h -> cols 8h..8h+8)
#   [ 32: 64)  Wk_all / sqrt(HEAD)
#   [ 64:192)  Wv_h @ Wproj_h              (head h -> cols 64+32h..64+32h+32)
#   [192:256)  zero pad (keeps the rel block lane-aligned at 256)
#   [256:384)  pre-skew relative block: col 256 + h*BL + m = Wq_h @ rel_emb[h, MAX_LEN-L+m]
#              for m in 0..L-1, zero for m in L..BL-1.
COL_Q = 0
COL_K = N_EMBD
COL_VPROJ = 2 * N_EMBD
COL_REL = 256
W_BIG_COLS = 384


def decoder_block_kernel(x_ref, a_ref, vec_ref, out_ref, *, exact_softmax: bool):
    x = x_ref[...]                                       # (BL, E) f32
    a = a_ref[...]                                       # (2E, 384) matmul dtype (f32 or bf16)
    mdt = a.dtype
    vec = vec_ref[...]                                   # (8, 384) f32
    bias_big = vec[0:1, :]                               # ln1b @ W_big_raw        (1, 384)
    b1 = vec[1:2, 0:4 * N_EMBD]                          # b1 + ln2b @ W1_raw      (1, 4E)
    bproj = vec[2:3, 0:N_EMBD]                           # (1, E)
    b2 = vec[3:4, 0:N_EMBD]                              # (1, E)

    w_big = a[0:N_EMBD, :]                               # (E, 384)
    w1 = a[N_EMBD:2 * N_EMBD, 0:4 * N_EMBD]              # (E, 4E)   (LN2 gamma folded in)
    w2t = a[N_EMBD:2 * N_EMBD, 4 * N_EMBD:8 * N_EMBD]    # (E, 4E) = W2.T

    # ---- LayerNorm 1 (affine folded into w_big / bias_big) ----
    mu = jnp.mean(x, axis=-1, keepdims=True)
    var = jnp.mean((x - mu) ** 2, axis=-1, keepdims=True)
    xn = (x - mu) * lax.rsqrt(var + LN_EPS)

    # ---- ONE fused MXU matmul: Q, K/sqrt(d), per-head V@Wproj, and Q@rel_emb ----
    big = jnp.dot(xn.astype(mdt), w_big, preferred_element_type=jnp.float32) + bias_big

    # ---- relative-position skew: one strided lane-roll on the XLU ----
    # base[i, h*BL+m] = q_h[i].rel_emb[h, MAX_LEN-L+m]; rolling row i by (i-(L-1)) mod 128 lands
    # the distance-d score at lane h*BL + j (j = i-d) for every allowed (i, j); everything that
    # wraps or spills lands on causally/batch-masked positions only.
    rel = pltpu.roll(big[:, COL_REL:COL_REL + 128], 128 - (L - 1), 1,
                     stride=1, stride_axis=0)            # (BL, 128)

    # ---- block-diagonal causal mask over the flattened batch ----
    row = lax.broadcasted_iota(jnp.int32, (BL, BL), 0)
    col = lax.broadcasted_iota(jnp.int32, (BL, BL), 1)
    bmask = jnp.int32(~(L - 1))                          # L is a power of two (asserted in prepare)
    allowed = ((row & bmask) == (col & bmask)) & (col <= row)

    attn = jnp.zeros((BL, N_EMBD), jnp.float32)
    for h in range(N_HEAD):                              # static unroll; N_HEAD is small
        q_h = big[:, COL_Q + h * HEAD:COL_Q + (h + 1) * HEAD]
        k_h = big[:, COL_K + h * HEAD:COL_K + (h + 1) * HEAD]   # already scaled by 1/sqrt(HEAD)
        s = lax.dot_general(q_h.astype(mdt), k_h.astype(mdt),
                            dimension_numbers=(((1,), (1,)), ((), ())),
                            preferred_element_type=jnp.float32)          # (BL, BL)
        s = s + rel[:, h * BL:(h + 1) * BL]              # rel add BEFORE masking (load-bearing)
        s = jnp.where(allowed, s, jnp.float32(NEG_INF))  # finite: diagonal always allowed
        m = jnp.max(s, axis=-1, keepdims=True)
        p = jnp.exp(s - m)
        denom = jnp.sum(p, axis=-1, keepdims=True)
        if exact_softmax:
            wei = p / denom
        else:
            wei = p * pl.reciprocal(denom, approx=True)  # EUP slot
        # attention dropout: identity (eval mode)
        vproj_h = big[:, COL_VPROJ + h * N_EMBD:COL_VPROJ + (h + 1) * N_EMBD]  # (BL, E)
        attn = attn + jnp.dot(wei.astype(mdt), vproj_h.astype(mdt),
                              preferred_element_type=jnp.float32)
    attn = attn + bproj
    # post-projection dropout: identity (eval mode)
    x1 = x + attn

    # ---- LayerNorm 2 (affine folded into w1 / b1) + FFN ----
    mu2 = jnp.mean(x1, axis=-1, keepdims=True)
    var2 = jnp.mean((x1 - mu2) ** 2, axis=-1, keepdims=True)
    x2n = (x1 - mu2) * lax.rsqrt(var2 + LN_EPS)

    h1 = jnp.maximum(
        jnp.dot(x2n.astype(mdt), w1, preferred_element_type=jnp.float32) + b1, 0.0)
    ff = lax.dot_general(h1.astype(mdt), w2t,
                         dimension_numbers=(((1,), (1,)), ((), ())),
                         preferred_element_type=jnp.float32) + b2
    # FFN dropout: identity (eval mode)
    out_ref[...] = x1 + ff


def make_decoder_block(exact_softmax: bool):
    kernel = functools.partial(decoder_block_kernel, exact_softmax=exact_softmax)
    vmem = pl.BlockSpec(memory_space=pltpu.MemorySpace.VMEM)   # whole array in VMEM, no grid

    @jax.jit
    def run(x, a_slab, vec):
        x2d = x.reshape(BL, N_EMBD)
        out2d = pl.pallas_call(
            kernel,
            out_shape=jax.ShapeDtypeStruct((BL, N_EMBD), jnp.float32),
            in_specs=[vmem, vmem, vmem],
            out_specs=vmem,
        )(x2d, a_slab, vec)
        return out2d.reshape(B, L, N_EMBD)

    return run


def prepare_params(ln1w, ln1b, wq, wk, wv, rel_emb, wprojT, bproj,
                   ln2w, ln2b, w1, b1, w2, b2, *, mxu_dtype=jnp.bfloat16):
    """One-time (x-independent) parameter packing / fusion.  Pure weight preprocessing."""
    assert L <= MAX_LEN, "relative embedding table assumes L <= max_len"
    assert L & (L - 1) == 0, "kernel batch-id trick assumes L is a power of two"

    wq_all = jnp.concatenate([wq[h] for h in range(N_HEAD)], axis=1)                  # (E, E)
    wk_all = jnp.concatenate([wk[h] for h in range(N_HEAD)], axis=1) / math.sqrt(HEAD)
    # V and the output projection fused: per-head block is Wv_h @ Wproj_h (E, E).
    vproj = jnp.concatenate([wv[h] @ wprojT[h] for h in range(N_HEAD)], axis=1)       # (E, H*E)

    # Pre-skew relative block (see kernel): col h*BL + m holds Wq_h @ rel_emb[h, MAX_LEN-L+m].
    m_idx = MAX_LEN - L + jnp.arange(L)
    rel_block = jnp.zeros((N_EMBD, 128), jnp.float32)
    for h in range(N_HEAD):
        rel_block = rel_block.at[:, h * BL:h * BL + L].set(wq[h] @ rel_emb[h, m_idx, :].T)

    w_big_raw = jnp.concatenate(
        [wq_all, wk_all, vproj,
         jnp.zeros((N_EMBD, COL_REL - 6 * N_EMBD), jnp.float32), rel_block], axis=1)  # (E, 384)

    # Fold the LayerNorm affines into the adjacent matmuls.
    w_big = ln1w.reshape(-1, 1) * w_big_raw
    bias_big = ln1b.reshape(1, -1) @ w_big_raw                                        # (1, 384)
    w1_f = ln2w.reshape(-1, 1) * w1
    b1_f = ln2b.reshape(1, -1) @ w1 + b1                                              # (1, 4E)

    a_slab = jnp.zeros((2 * N_EMBD, W_BIG_COLS), jnp.float32)
    a_slab = a_slab.at[0:N_EMBD, :].set(w_big)
    a_slab = a_slab.at[N_EMBD:, 0:4 * N_EMBD].set(w1_f)
    a_slab = a_slab.at[N_EMBD:, 4 * N_EMBD:8 * N_EMBD].set(w2.T)
    a_slab = a_slab.astype(mxu_dtype)

    vec = jnp.zeros((8, W_BIG_COLS), jnp.float32)
    vec = vec.at[0, :].set(bias_big[0])
    vec = vec.at[1, 0:4 * N_EMBD].set(b1_f[0])
    vec = vec.at[2, 0:N_EMBD].set(bproj[0])
    vec = vec.at[3, 0:N_EMBD].set(b2[0])
    return a_slab, vec


def reference(x, ln1w, ln1b, wq, wk, wv, rel_emb, wprojT, bproj,
              ln2w, ln2b, w1, b1, w2, b2):
    """Pure-JAX reference mirroring the PyTorch code (incl. pad/reshape skewing trick)."""
    def ln(z, w, b):
        mu = z.mean(-1, keepdims=True)
        var = ((z - mu) ** 2).mean(-1, keepdims=True)
        return (z - mu) / jnp.sqrt(var + LN_EPS) * w + b

    xn = ln(x, ln1w[0], ln1b[0])
    rel_idx = jnp.arange(-L + 1, L) + (MAX_LEN - 1)
    heads = []
    for h in range(N_HEAD):
        q = xn @ wq[h]
        k = xn @ wk[h]
        v = xn @ wv[h]
        scores = jnp.einsum('bld,bmd->blm', q, k) / math.sqrt(HEAD)
        e = rel_emb[h][rel_idx]                               # (2L-1, HEAD)
        M = jnp.einsum('bld,rd->blr', q, e)                   # (B, L, 2L-1)
        Mp = jnp.pad(M, ((0, 0), (0, 0), (1, 0)))             # pad left
        Ms = Mp.reshape(B, 2 * L, L)[:, 1:, :]                # skew
        s_rel = Ms.reshape(B, L, 2 * L - 1)[:, :, :L]
        scores = scores + s_rel
        mask = jnp.tril(jnp.ones((L, L)))
        scores = jnp.where(mask == 0, -jnp.inf, scores)
        wei = jax.nn.softmax(scores, axis=-1)
        heads.append(wei @ v)
    cat = jnp.concatenate(heads, axis=-1)
    attn = cat @ wprojT.reshape(N_EMBD, N_EMBD) + bproj[0]
    x1 = x + attn
    x2n = ln(x1, ln2w[0], ln2b[0])
    ff = jnp.maximum(x2n @ w1 + b1[0], 0.0) @ w2 + b2[0]
    return x1 + ff


if __name__ == "__main__":
    key = jax.random.PRNGKey(0)
    ks = jax.random.split(key, 16)
    scale = 0.1

    x = jax.random.normal(ks[0], (B, L, N_EMBD), jnp.float32)

    # Random LN affines / biases so the weight-folding paths are actually exercised.
    ln1w = 1.0 + 0.1 * jax.random.normal(ks[1], (1, N_EMBD), jnp.float32)
    ln1b = 0.1 * jax.random.normal(ks[2], (1, N_EMBD), jnp.float32)
    ln2w = 1.0 + 0.1 * jax.random.normal(ks[3], (1, N_EMBD), jnp.float32)
    ln2b = 0.1 * jax.random.normal(ks[4], (1, N_EMBD), jnp.float32)
    wq = jax.random.normal(ks[5], (N_HEAD, N_EMBD, HEAD), jnp.float32) * scale
    wk = jax.random.normal(ks[6], (N_HEAD, N_EMBD, HEAD), jnp.float32) * scale
    wv = jax.random.normal(ks[7], (N_HEAD, N_EMBD, HEAD), jnp.float32) * scale
    rel_emb = jax.random.normal(ks[8], (N_HEAD, 2 * MAX_LEN - 1, HEAD), jnp.float32) * scale
    wprojT = jax.random.normal(ks[9], (N_HEAD, HEAD, N_EMBD), jnp.float32) * scale
    bproj = jax.random.normal(ks[10], (1, N_EMBD), jnp.float32) * scale
    w1 = jax.random.normal(ks[11], (N_EMBD, 4 * N_EMBD), jnp.float32) * scale
    b1 = jax.random.normal(ks[12], (1, 4 * N_EMBD), jnp.float32) * scale
    w2 = jax.random.normal(ks[13], (4 * N_EMBD, N_EMBD), jnp.float32) * scale
    b2 = jax.random.normal(ks[14], (1, N_EMBD), jnp.float32) * scale

    params = (ln1w, ln1b, wq, wk, wv, rel_emb, wprojT, bproj, ln2w, ln2b, w1, b1, w2, b2)
    ref = reference(x, *params)

    # 1) Precise variant (f32 MXU operands + exact softmax divide): tight check so the
    #    relative-position placement / roll skew / LN folding cannot hide under approximations.
    a32, vec32 = prepare_params(*params, mxu_dtype=jnp.float32)
    out_precise = make_decoder_block(exact_softmax=True)(x, a32, vec32)
    jax.block_until_ready(out_precise)
    err = float(jnp.max(jnp.abs(out_precise - ref)))
    assert err < 3e-3, f"precise-variant mismatch vs reference: {err}"

    # 2) Fast variant (bf16 MXU operands + EUP approximate-reciprocal softmax).
    abf, vecbf = prepare_params(*params, mxu_dtype=jnp.bfloat16)
    out_fast = make_decoder_block(exact_softmax=False)(x, abf, vecbf)
    jax.block_until_ready(out_fast)
    err_fast = float(jnp.max(jnp.abs(out_fast - ref)))
    assert err_fast < 3e-2, f"fast-variant mismatch vs reference: {err_fast}"

    print("KERNEL_OK")
</pallas_src>

<mosaic_0001>
module attributes {stable_mosaic.version = 11 : i64} {
  func.func @decoder_block_kernel(%arg0: memref<16x32xf32, #tpu.memory_space<vmem>>, %arg1: memref<64x384xf32, #tpu.memory_space<vmem>>, %arg2: memref<8x384xf32, #tpu.memory_space<vmem>>, %arg3: memref<16x32xf32, #tpu.memory_space<vmem>>) attributes {dimension_semantics = [], scalar_prefetch = 0 : i64, scratch_operands = 0 : i64, tpu.core_type = #tpu.core_type<tc>} {
    %c0 = arith.constant 0 : index
    %c0_0 = arith.constant 0 : index
    %0 = vector.load %arg0[%c0, %c0_0] : memref<16x32xf32, #tpu.memory_space<vmem>>, vector<16x32xf32>
    %c0_1 = arith.constant 0 : index
    %c0_2 = arith.constant 0 : index
    %1 = vector.load %arg1[%c0_1, %c0_2] : memref<64x384xf32, #tpu.memory_space<vmem>>, vector<64x384xf32>
    %c0_3 = arith.constant 0 : index
    %c0_4 = arith.constant 0 : index
    %2 = vector.load %arg2[%c0_3, %c0_4] : memref<8x384xf32, #tpu.memory_space<vmem>>, vector<8x384xf32>
    %3 = vector.extract_strided_slice %2 {offsets = [0, 0], sizes = [1, 384], strides = [1, 1]} : vector<8x384xf32> to vector<1x384xf32>
    %4 = vector.extract_strided_slice %2 {offsets = [1, 0], sizes = [1, 128], strides = [1, 1]} : vector<8x384xf32> to vector<1x128xf32>
    %5 = vector.extract_strided_slice %2 {offsets = [2, 0], sizes = [1, 32], strides = [1, 1]} : vector<8x384xf32> to vector<1x32xf32>
    %6 = vector.extract_strided_slice %2 {offsets = [3, 0], sizes = [1, 32], strides = [1, 1]} : vector<8x384xf32> to vector<1x32xf32>
    %7 = vector.extract_strided_slice %1 {offsets = [0, 0], sizes = [32, 384], strides = [1, 1]} : vector<64x384xf32> to vector<32x384xf32>
    %8 = vector.extract_strided_slice %1 {offsets = [32, 0], sizes = [32, 128], strides = [1, 1]} : vector<64x384xf32> to vector<32x128xf32>
    %9 = vector.extract_strided_slice %1 {offsets = [32, 128], sizes = [32, 128], strides = [1, 1]} : vector<64x384xf32> to vector<32x128xf32>
    %cst = arith.constant dense<0.000000e+00> : vector<16xf32>
    %10 = vector.multi_reduction <add>, %0, %cst [1] : vector<16x32xf32> to vector<16xf32>
    %11 = vector.shape_cast %10 : vector<16xf32> to vector<16x1xf32>
    %cst_5 = arith.constant 3.200000e+01 : f32
    %12 = vector.broadcast %cst_5 : f32 to vector<16x1xf32>
    %13 = arith.divf %11, %12 : vector<16x1xf32>
    %14 = vector.broadcast %13 : vector<16x1xf32> to vector<16x32xf32>
    %15 = arith.subf %0, %14 : vector<16x32xf32>
    %16 = arith.mulf %15, %15 : vector<16x32xf32>
    %cst_6 = arith.constant dense<0.000000e+00> : vector<16xf32>
    %17 = vector.multi_reduction <add>, %16, %cst_6 [1] : vector<16x32xf32> to vector<16xf32>
    %18 = vector.shape_cast %17 : vector<16xf32> to vector<16x1xf32>
    %cst_7 = arith.constant 3.200000e+01 : f32
    %19 = vector.broadcast %cst_7 : f32 to vector<16x1xf32>
    %20 = arith.divf %18, %19 : vector<16x1xf32>
    %21 = vector.broadcast %13 : vector<16x1xf32> to vector<16x32xf32>
    %22 = arith.subf %0, %21 : vector<16x32xf32>
    %cst_8 = arith.constant 9.99999974E-6 : f32
    %23 = vector.broadcast %cst_8 : f32 to vector<16x1xf32>
    %24 = arith.addf %20, %23 : vector<16x1xf32>
    %25 = math.rsqrt %24 : vector<16x1xf32>
    %26 = vector.broadcast %25 : vector<16x1xf32> to vector<16x32xf32>
    %27 = arith.mulf %22, %26 : vector<16x32xf32>
    %cst_9 = arith.constant dense<0.000000e+00> : vector<16x384xf32>
    %28 = tpu.matmul %27, %7, %cst_9 {dimension_numbers = #tpu.dot_dimension_numbers<[1], [0], [0], [1], [0, 0, 1, 1], [], []>} : vector<16x32xf32>, vector<32x384xf32>, vector<16x384xf32> -> vector<16x384xf32>
    %29 = vector.broadcast %3 : vector<1x384xf32> to vector<16x384xf32>
    %30 = arith.addf %28, %29 : vector<16x384xf32>
    %31 = vector.extract_strided_slice %30 {offsets = [0, 256], sizes = [16, 128], strides = [1, 1]} : vector<16x384xf32> to vector<16x128xf32>
    %c121_i32 = arith.constant 121 : i32
    %32 = tpu.dynamic_rotate %31 by %c121_i32 dim 1 {stride = 1 : si32, stride_dimension = 0 : si32} : vector<16x128xf32>, i32 -> vector<16x128xf32>
    %33 = tpu.iota {dimensions = array<i32: 0>} : vector<16x16xi32>
    %34 = tpu.iota {dimensions = array<i32: 1>} : vector<16x16xi32>
    %c-8_i32 = arith.constant -8 : i32
    %35 = vector.broadcast %c-8_i32 : i32 to vector<16x16xi32>
    %36 = arith.andi %33, %35 : vector<16x16xi32>
    %c-8_i32_10 = arith.constant -8 : i32
    %37 = vector.broadcast %c-8_i32_10 : i32 to vector<16x16xi32>
    %38 = arith.andi %34, %37 : vector<16x16xi32>
    %39 = arith.cmpi eq, %36, %38 : vector<16x16xi32>
    %40 = arith.cmpi sle, %34, %33 : vector<16x16xi32>
    %41 = arith.andi %39, %40 : vector<16x16xi1>
    %cst_11 = arith.constant 0.000000e+00 : f32
    %42 = vector.broadcast %cst_11 : f32 to vector<16x32xf32>
    %43 = vector.extract_strided_slice %30 {offsets = [0, 0], sizes = [16, 8], strides = [1, 1]} : vector<16x384xf32> to vector<16x8xf32>
    %44 = vector.extract_strided_slice %30 {offsets = [0, 32], sizes = [16, 8], strides = [1, 1]} : vector<16x384xf32> to vector<16x8xf32>
    %cst_12 = arith.constant dense<0.000000e+00> : vector<16x16xf32>
    %45 = tpu.matmul %43, %44, %cst_12 {dimension_numbers = #tpu.dot_dimension_numbers<[1], [1], [0], [0], [0, 0, 1, 0], [], []>} : vector<16x8xf32>, vector<16x8xf32>, vector<16x16xf32> -> vector<16x16xf32>
    %46 = vector.extract_strided_slice %32 {offsets = [0, 0], sizes = [16, 16], strides = [1, 1]} : vector<16x128xf32> to vector<16x16xf32>
    %47 = arith.addf %45, %46 : vector<16x16xf32>
    %cst_13 = arith.constant -1.000000e+30 : f32
    %48 = vector.broadcast %cst_13 : f32 to vector<16x16xf32>
    %49 = arith.select %41, %47, %48 : vector<16x16xi1>, vector<16x16xf32>
    %cst_14 = arith.constant dense<0xFF800000> : vector<16xf32>
    %50 = vector.multi_reduction <maximumf>, %49, %cst_14 [1] : vector<16x16xf32> to vector<16xf32>
    %51 = vector.shape_cast %50 : vector<16xf32> to vector<16x1xf32>
    %52 = vector.broadcast %51 : vector<16x1xf32> to vector<16x16xf32>
    %53 = arith.subf %49, %52 : vector<16x16xf32>
    %54 = math.exp %53 : vector<16x16xf32>
    %cst_15 = arith.constant dense<0.000000e+00> : vector<16xf32>
    %55 = vector.multi_reduction <add>, %54, %cst_15 [1] : vector<16x16xf32> to vector<16xf32>
    %56 = vector.shape_cast %55 : vector<16xf32> to vector<16x1xf32>
    %57 = vector.broadcast %56 : vector<16x1xf32> to vector<16x16xf32>
    %58 = arith.divf %54, %57 : vector<16x16xf32>
    %59 = vector.extract_strided_slice %30 {offsets = [0, 64], sizes = [16, 32], strides = [1, 1]} : vector<16x384xf32> to vector<16x32xf32>
    %cst_16 = arith.constant dense<0.000000e+00> : vector<16x32xf32>
    %60 = tpu.matmul %58, %59, %cst_16 {dimension_numbers = #tpu.dot_dimension_numbers<[1], [0], [0], [1], [0, 0, 1, 1], [], []>} : vector<16x16xf32>, vector<16x32xf32>, vector<16x32xf32> -> vector<16x32xf32>
    %61 = arith.addf %42, %60 : vector<16x32xf32>
    %62 = vector.extract_strided_slice %30 {offsets = [0, 8], sizes = [16, 8], strides = [1, 1]} : vector<16x384xf32> to vector<16x8xf32>
    %63 = vector.extract_strided_slice %30 {offsets = [0, 40], sizes = [16, 8], strides = [1, 1]} : vector<16x384xf32> to vector<16x8xf32>
    %cst_17 = arith.constant dense<0.000000e+00> : vector<16x16xf32>
    %64 = tpu.matmul %62, %63, %cst_17 {dimension_numbers = #tpu.dot_dimension_numbers<[1], [1], [0], [0], [0, 0, 1, 0], [], []>} : vector<16x8xf32>, vector<16x8xf32>, vector<16x16xf32> -> vector<16x16xf32>
    %65 = vector.extract_strided_slice %32 {offsets = [0, 16], sizes = [16, 16], strides = [1, 1]} : vector<16x128xf32> to vector<16x16xf32>
    %66 = arith.addf %64, %65 : vector<16x16xf32>
    %cst_18 = arith.constant -1.000000e+30 : f32
    %67 = vector.broadcast %cst_18 : f32 to vector<16x16xf32>
    %68 = arith.select %41, %66, %67 : vector<16x16xi1>, vector<16x16xf32>
    %cst_19 = arith.constant dense<0xFF800000> : vector<16xf32>
    %69 = vector.multi_reduction <maximumf>, %68, %cst_19 [1] : vector<16x16xf32> to vector<16xf32>
    %70 = vector.shape_cast %69 : vector<16xf32> to vector<16x1xf32>
    %71 = vector.broadcast %70 : vector<16x1xf32> to vector<16x16xf32>
    %72 = arith.subf %68, %71 : vector<16x16xf32>
    %73 = math.exp %72 : vector<16x16xf32>
    %cst_20 = arith.constant dense<0.000000e+00> : vector<16xf32>
    %74 = vector.multi_reduction <add>, %73, %cst_20 [1] : vector<16x16xf32> to vector<16xf32>
    %75 = vector.shape_cast %74 : vector<16xf32> to vector<16x1xf32>
    %76 = vector.broadcast %75 : vector<16x1xf32> to vector<16x16xf32>
    %77 = arith.divf %73, %76 : vector<16x16xf32>
    %78 = vector.extract_strided_slice %30 {offsets = [0, 96], sizes = [16, 32], strides = [1, 1]} : vector<16x384xf32> to vector<16x32xf32>
    %cst_21 = arith.constant dense<0.000000e+00> : vector<16x32xf32>
    %79 = tpu.matmul %77, %78, %cst_21 {dimension_numbers = #tpu.dot_dimension_numbers<[1], [0], [0], [1], [0, 0, 1, 1], [], []>} : vector<16x16xf32>, vector<16x32xf32>, vector<16x32xf32> -> vector<16x32xf32>
    %80 = arith.addf %61, %79 : vector<16x32xf32>
    %81 = vector.extract_strided_slice %30 {offsets = [0, 16], sizes = [16, 8], strides = [1, 1]} : vector<16x384xf32> to vector<16x8xf32>
    %82 = vector.extract_strided_slice %30 {offsets = [0, 48], sizes = [16, 8], strides = [1, 1]} : vector<16x384xf32> to vector<16x8xf32>
    %cst_22 = arith.constant dense<0.000000e+00> : vector<16x16xf32>
    %83 = tpu.matmul %81, %82, %cst_22 {dimension_numbers = #tpu.dot_dimension_numbers<[1], [1], [0], [0], [0, 0, 1, 0], [], []>} : vector<16x8xf32>, vector<16x8xf32>, vector<16x16xf32> -> vector<16x16xf32>
    %84 = vector.extract_strided_slice %32 {offsets = [0, 32], sizes = [16, 16], strides = [1, 1]} : vector<16x128xf32> to vector<16x16xf32>
    %85 = arith.addf %83, %84 : vector<16x16xf32>
    %cst_23 = arith.constant -1.000000e+30 : f32
    %86 = vector.broadcast %cst_23 : f32 to vector<16x16xf32>
    %87 = arith.select %41, %85, %86 : vector<16x16xi1>, vector<16x16xf32>
    %cst_24 = arith.constant dense<0xFF800000> : vector<16xf32>
    %88 = vector.multi_reduction <maximumf>, %87, %cst_24 [1] : vector<16x16xf32> to vector<16xf32>
    %89 = vector.shape_cast %88 : vector<16xf32> to vector<16x1xf32>
    %90 = vector.broadcast %89 : vector<16x1xf32> to vector<16x16xf32>
    %91 = arith.subf %87, %90 : vector<16x16xf32>
    %92 = math.exp %91 : vector<16x16xf32>
    %cst_25 = arith.constant dense<0.000000e+00> : vector<16xf32>
    %93 = vector.multi_reduction <add>, %92, %cst_25 [1] : vector<16x16xf32> to vector<16xf32>
    %94 = vector.shape_cast %93 : vector<16xf32> to vector<16x1xf32>
    %95 = vector.broadcast %94 : vector<16x1xf32> to vector<16x16xf32>
    %96 = arith.divf %92, %95 : vector<16x16xf32>
    %97 = vector.extract_strided_slice %30 {offsets = [0, 128], sizes = [16, 32], strides = [1, 1]} : vector<16x384xf32> to vector<16x32xf32>
    %cst_26 = arith.constant dense<0.000000e+00> : vector<16x32xf32>
    %98 = tpu.matmul %96, %97, %cst_26 {dimension_numbers = #tpu.dot_dimension_numbers<[1], [0], [0], [1], [0, 0, 1, 1], [], []>} : vector<16x16xf32>, vector<16x32xf32>, vector<16x32xf32> -> vector<16x32xf32>
    %99 = arith.addf %80, %98 : vector<16x32xf32>
    %100 = vector.extract_strided_slice %30 {offsets = [0, 24], sizes = [16, 8], strides = [1, 1]} : vector<16x384xf32> to vector<16x8xf32>
    %101 = vector.extract_strided_slice %30 {offsets = [0, 56], sizes = [16, 8], strides = [1, 1]} : vector<16x384xf32> to vector<16x8xf32>
    %cst_27 = arith.constant dense<0.000000e+00> : vector<16x16xf32>
    %102 = tpu.matmul %100, %101, %cst_27 {dimension_numbers = #tpu.dot_dimension_numbers<[1], [1], [0], [0], [0, 0, 1, 0], [], []>} : vector<16x8xf32>, vector<16x8xf32>, vector<16x16xf32> -> vector<16x16xf32>
    %103 = vector.extract_strided_slice %32 {offsets = [0, 48], sizes = [16, 16], strides = [1, 1]} : vector<16x128xf32> to vector<16x16xf32>
    %104 = arith.addf %102, %103 : vector<16x16xf32>
    %cst_28 = arith.constant -1.000000e+30 : f32
    %105 = vector.broadcast %cst_28 : f32 to vector<16x16xf32>
    %106 = arith.select %41, %104, %105 : vector<16x16xi1>, vector<16x16xf32>
    %cst_29 = arith.constant dense<0xFF800000> : vector<16xf32>
    %107 = vector.multi_reduction <maximumf>, %106, %cst_29 [1] : vector<16x16xf32> to vector<16xf32>
    %108 = vector.shape_cast %107 : vector<16xf32> to vector<16x1xf32>
    %109 = vector.broadcast %108 : vector<16x1xf32> to vector<16x16xf32>
    %110 = arith.subf %106, %109 : vector<16x16xf32>
    %111 = math.exp %110 : vector<16x16xf32>
    %cst_30 = arith.constant dense<0.000000e+00> : vector<16xf32>
    %112 = vector.multi_reduction <add>, %111, %cst_30 [1] : vector<16x16xf32> to vector<16xf32>
    %113 = vector.shape_cast %112 : vector<16xf32> to vector<16x1xf32>
    %114 = vector.broadcast %113 : vector<16x1xf32> to vector<16x16xf32>
    %115 = arith.divf %111, %114 : vector<16x16xf32>
    %116 = vector.extract_strided_slice %30 {offsets = [0, 160], sizes = [16, 32], strides = [1, 1]} : vector<16x384xf32> to vector<16x32xf32>
    %cst_31 = arith.constant dense<0.000000e+00> : vector<16x32xf32>
    %117 = tpu.matmul %115, %116, %cst_31 {dimension_numbers = #tpu.dot_dimension_numbers<[1], [0], [0], [1], [0, 0, 1, 1], [], []>} : vector<16x16xf32>, vector<16x32xf32>, vector<16x32xf32> -> vector<16x32xf32>
    %118 = arith.addf %99, %117 : vector<16x32xf32>
    %119 = vector.broadcast %5 : vector<1x32xf32> to vector<16x32xf32>
    %120 = arith.addf %118, %119 : vector<16x32xf32>
    %121 = arith.addf %0, %120 : vector<16x32xf32>
    %cst_32 = arith.constant dense<0.000000e+00> : vector<16xf32>
    %122 = vector.multi_reduction <add>, %121, %cst_32 [1] : vector<16x32xf32> to vector<16xf32>
    %123 = vector.shape_cast %122 : vector<16xf32> to vector<16x1xf32>
    %cst_33 = arith.constant 3.200000e+01 : f32
    %124 = vector.broadcast %cst_33 : f32 to vector<16x1xf32>
    %125 = arith.divf %123, %124 : vector<16x1xf32>
    %126 = vector.broadcast %125 : vector<16x1xf32> to vector<16x32xf32>
    %127 = arith.subf %121, %126 : vector<16x32xf32>
    %128 = arith.mulf %127, %127 : vector<16x32xf32>
    %cst_34 = arith.constant dense<0.000000e+00> : vector<16xf32>
    %129 = vector.multi_reduction <add>, %128, %cst_34 [1] : vector<16x32xf32> to vector<16xf32>
    %130 = vector.shape_cast %129 : vector<16xf32> to vector<16x1xf32>
    %cst_35 = arith.constant 3.200000e+01 : f32
    %131 = vector.broadcast %cst_35 : f32 to vector<16x1xf32>
    %132 = arith.divf %130, %131 : vector<16x1xf32>
    %133 = vector.broadcast %125 : vector<16x1xf32> to vector<16x32xf32>
    %134 = arith.subf %121, %133 : vector<16x32xf32>
    %cst_36 = arith.constant 9.99999974E-6 : f32
    %135 = vector.broadcast %cst_36 : f32 to vector<16x1xf32>
    %136 = arith.addf %132, %135 : vector<16x1xf32>
    %137 = math.rsqrt %136 : vector<16x1xf32>
    %138 = vector.broadcast %137 : vector<16x1xf32> to vector<16x32xf32>
    %139 = arith.mulf %134, %138 : vector<16x32xf32>
    %cst_37 = arith.constant dense<0.000000e+00> : vector<16x128xf32>
    %140 = tpu.matmul %139, %8, %cst_37 {dimension_numbers = #tpu.dot_dimension_numbers<[1], [0], [0], [1], [0, 0, 1, 1], [], []>} : vector<16x32xf32>, vector<32x128xf32>, vector<16x128xf32> -> vector<16x128xf32>
    %141 = vector.broadcast %4 : vector<1x128xf32> to vector<16x128xf32>
    %142 = arith.addf %140, %141 : vector<16x128xf32>
    %cst_38 = arith.constant 0.000000e+00 : f32
    %143 = vector.broadcast %cst_38 : f32 to vector<16x128xf32>
    %144 = arith.maximumf %142, %143 : vector<16x128xf32>
    %cst_39 = arith.constant dense<0.000000e+00> : vector<16x32xf32>
    %145 = tpu.matmul %144, %9, %cst_39 {dimension_numbers = #tpu.dot_dimension_numbers<[1], [1], [0], [0], [0, 0, 1, 0], [], []>} : vector<16x128xf32>, vector<32x128xf32>, vector<16x32xf32> -> vector<16x32xf32>
    %146 = vector.broadcast %6 : vector<1x32xf32> to vector<16x32xf32>
    %147 = arith.addf %145, %146 : vector<16x32xf32>
    %148 = arith.addf %121, %147 : vector<16x32xf32>
    %c0_40 = arith.constant 0 : index
    %c0_41 = arith.constant 0 : index
    %149 = vector.load %arg3[%c0_40, %c0_41] : memref<16x32xf32, #tpu.memory_space<vmem>>, vector<16x32xf32>
    tpu.vector_store %arg3[%c0_40, %c0_41], %148 {strides = array<i32>} : memref<16x32xf32, #tpu.memory_space<vmem>>, vector<16x32xf32>,
    return
  }
}

</mosaic_0001>

<llo_original>
// kernel: run.1
$region0: #{run.1}
  #allocation0 [shape = 'u32[]', space=smem, size = 0x4, offset = 0x4, fixed_abs, tag = 'smem constant byte address 0x4 - core index']
  #allocation1 [shape = 'u32[144,128]{1,0:T(1,128)}', space=vmem, size = 0x12000, scoped, tag = 'internal scratch']
  %s0 = inlined_call_operand.hbm [shape: f32[16,32], index: 0, kind: input, shape index: {}]
  %s1 = inlined_call_operand.hbm [shape: f32[64,384], index: 1, kind: input, shape index: {}]
  %s2 = inlined_call_operand.hbm [shape: f32[8,384], index: 2, kind: input, shape index: {}]
  %s3 = inlined_call_operand.hbm [shape: f32[16,32], index: 3, kind: output, shape index: {}]
  %s4 = sld [smem:[#allocation0]]
  $region34: #{run.1} parent=0
    _
  %s6 = ssub.s32 1, %s4
  %s7 = scalar_select 0, %s6, %s4
  $region1: #{run.1} parent=0
    #allocation2 [shape = 'u8[8192]{0}', space=vmem, size = 0x2000, scoped, tag = 'input window, operand 0, single buffered']
    #allocation3 [shape = 's32[1]{0}', space=sflag, size = 0x4, scoped, tag = 'scoped memory for run.1']
    #allocation4 [shape = 's32[1]{0}', space=sflag, size = 0x4, scoped, tag = 'scoped memory for run.1']
    #allocation5 [shape = 'u8[98304]{0}', space=vmem, size = 0x18000, scoped, tag = 'input window, operand 1, single buffered']
    #allocation6 [shape = 's32[1]{0}', space=sflag, size = 0x4, scoped, tag = 'scoped memory for run.1']
    #allocation7 [shape = 'u8[12288]{0}', space=vmem, size = 0x3000, scoped, tag = 'input window, operand 2, single buffered']
    #allocation8 [shape = 'u8[8192]{0}', space=vmem, size = 0x2000, scoped, tag = 'output window, operand 0, single buffered']
    %8 = vsyncpa [#allocation3], 0
    %9 = vsyncpa [#allocation6], 0
    %10 = vsyncpa [#allocation4], 0
    // Predicated region
    $region2: #{run.1} parent=1 // pred_check
      _
    $region3: #{run.1} parent=1 // pred_check_branch
      %12 = sbr.rel (0) target = $region5
    $region4: #{run.1} parent=1 // pred_region
      %s14 = ssub.s32 256, 256
      %15 = vsyncadd [#allocation3], %s14
      %s16 = sshll.u32 [#allocation2], 4
      %s17 = int_to_ptr.vmem [resolvable:$true] %s16
      %22 = dma.hbm_to_vmem [thread:$0]  %s0, 256, %s17, [#allocation3], 128, 128, 8
    $region5: #{run.1} parent=1 // pred_fallthru
      _
    // Predicated region
    $region6: #{run.1} parent=1 // pred_check
      _
    $region7: #{run.1} parent=1 // pred_check_branch
      %24 = sbr.rel (0) target = $region9
    $region8: #{run.1} parent=1 // pred_region
      %s26 = ssub.s32 3072, 3072
      %27 = vsyncadd [#allocation6], %s26
      %s28 = sshll.u32 [#allocation5], 4
      %s29 = int_to_ptr.vmem [resolvable:$true] %s28
      %34 = dma.hbm_to_vmem [thread:$0]  %s1, 3072, %s29, [#allocation6], 384, 384, 24
    $region9: #{run.1} parent=1 // pred_fallthru
      _
    // Predicated region
    $region10: #{run.1} parent=1 // pred_check
      _
    $region11: #{run.1} parent=1 // pred_check_branch
      %36 = sbr.rel (0) target = $region13
    $region12: #{run.1} parent=1 // pred_region
      %s38 = ssub.s32 384, 384
      %39 = vsyncadd [#allocation6], %s38
      %s41 = sshll.u32 [#allocation7], 4
      %s42 = int_to_ptr.vmem [resolvable:$true] %s41
      %44 = dma.hbm_to_vmem [thread:$0]  %s2, 384, %s42, [#allocation6]
    $region13: #{run.1} parent=1 // pred_fallthru
      _
    // Predicated region
    $region14: #{run.1} parent=1 // pred_check
      _
    $region15: #{run.1} parent=1 // pred_check_branch
      %46 = sbr.rel (0) target = $region17
    $region16: #{run.1} parent=1 // pred_region
      %47 = dma.done [#allocation3], 256
    $region17: #{run.1} parent=1 // pred_fallthru
      _
    // Predicated region
    $region18: #{run.1} parent=1 // pred_check
      _
    $region19: #{run.1} parent=1 // pred_check_branch
      %49 = sbr.rel (0) target = $region21
    $region20: #{run.1} parent=1 // pred_region
      %50 = dma.done [#allocation6], 3072
    $region21: #{run.1} parent=1 // pred_fallthru
      _
    // Predicated region
    $region22: #{run.1} parent=1 // pred_check
      _
    $region23: #{run.1} parent=1 // pred_check_branch
      %52 = sbr.rel (0) target = $region25
    $region24: #{run.1} parent=1 // pred_region
      %53 = dma.done [#allocation6], 384
    $region25: #{run.1} parent=1 // pred_fallthru
      _
    %v54 = vld [vmem:[#allocation2] sm:$0xff]
    %v55 = vld [vmem:[#allocation2 + $0x8] sm:$0xff]
    %v56 = vld [vmem:[#allocation5] sm:$0xff]
    %v57 = vld [vmem:[#allocation5 + $0x8] sm:$0xff]
    %v58 = vld [vmem:[#allocation5 + $0x10] sm:$0xff]
    %v59 = vld [vmem:[#allocation5 + $0x18] sm:$0xff]
    %v60 = vld [vmem:[#allocation5 + $0x20] sm:$0xff]
    %v61 = vld [vmem:[#allocation5 + $0x28] sm:$0xff]
    %v62 = vld [vmem:[#allocation5 + $0x30] sm:$0xff]
    %v63 = vld [vmem:[#allocation5 + $0x38] sm:$0xff]
    %v64 = vld [vmem:[#allocation5 + $0x40] sm:$0xff]
    %v65 = vld [vmem:[#allocation5 + $0x48] sm:$0xff]
    %v66 = vld [vmem:[#allocation5 + $0x50] sm:$0xff]
    %v67 = vld [vmem:[#allocation5 + $0x58] sm:$0xff]
    %v68 = vld [vmem:[#allocation5 + $0x60] sm:$0xff]
    %v69 = vld [vmem:[#allocation5 + $0x68] sm:$0xff]
    %v70 = vld [vmem:[#allocation5 + $0x78] sm:$0xff]
    %v71 = vld [vmem:[#allocation5 + $0x80] sm:$0xff]
    %v72 = vld [vmem:[#allocation5 + $0x90] sm:$0xff]
    %v73 = vld [vmem:[#allocation5 + $0x98] sm:$0xff]
    %v74 = vld [vmem:[#allocation5 + $0xa8] sm:$0xff]
    %v75 = vld [vmem:[#allocation5 + $0xb0] sm:$0xff]
    %v76 = vld [vmem:[#allocation7] sm:$0xff]
    %v77 = vld [vmem:[#allocation7 + $0x8] sm:$0xff]
    %v78 = vld [vmem:[#allocation7 + $0x10] sm:$0xff]
    %vm79 = vcmask 261120
    %v80 = vsel %vm79, %v54, 0.0
    %81 = vadd.xlane.f32.xlu0 %v80
    %v82 = vpop.xlane.xlu0 %81
    %v83 = vsel %vm79, %v55, 0.0
    %84 = vadd.xlane.f32.xlu0 %v83
    %v85 = vpop.xlane.xlu0 %84
    %v86 = vrcp.pop 32.0
    %v87 = vmul.f32 %v82, %v86
    %v88 = vmul.f32 %v85, %v86
    %v89 = vsub.f32 %v54, %v87
    %v90 = vsub.f32 %v55, %v88
    %v91 = vmul.f32 %v89, %v89
    %v92 = vmul.f32 %v90, %v90
    %v93 = vsel %vm79, %v91, 0.0
    %94 = vadd.xlane.f32.xlu0 %v93
    %v95 = vpop.xlane.xlu0 %94
    %v96 = vsel %vm79, %v92, 0.0
    %97 = vadd.xlane.f32.xlu0 %v96
    %v98 = vpop.xlane.xlu0 %97
    %v99 = vmul.f32 %v95, %v86
    %v100 = vmul.f32 %v98, %v86
    %v101 = vadd.f32 %v99, 1e-05
    %v102 = vadd.f32 %v100, 1e-05
    %v103 = vrsqrt.pop %v101
    %v104 = vrsqrt.pop %v102
    %v105 = vmul.f32 %v89, %v103
    %v106 = vmul.f32 %v90, %v104
    %v107 = vlaneseq
    %v108 = vshrl.u32 %v107, 7
    %v109 = vsub.s32 0, %v108
    %v110 = vrot.slane %v76, %v109
    %v111 = vlaneseq
    %v112 = vshrl.u32 %v111, 7
    %v113 = vsub.s32 0, %v112
    %v114 = vrot.slane %v77, %v113
    %v115 = vlaneseq
    %v116 = vshrl.u32 %v115, 7
    %v117 = vsub.s32 0, %v116
    %v118 = vrot.slane %v78, %v117
    %v120 = vsel %vm79, %v105, 0
    %v123 = vsel %vm79, %v106, 0
    %125 = vmatprep.subr.mxu0 %v57
    %126 = vmatpush1.msra.mxu0 %v56
    %127 = vmatprep.subr.mxu0 %v60
    %128 = vmatpush1.msra.mxu0 %v59
    %129 = vmatprep.subr.mxu0 %v63
    %130 = vmatpush1.msra.mxu0 %v62
    %131 = vmatprep.subr.mxu0 %v66
    %132 = vmatpush1.msra.mxu0 %v65
    %133 = vmatprep.subr.mxu0 0.0
    %134 = vmatpush1.msra.mxu0 0.0
    %135 = vmatprep.subr.mxu0 0.0
    %136 = vmatpush1.msra.mxu0 0.0
    %137 = vmatprep.subr.mxu0 0.0
    %138 = vmatpush1.msra.mxu0 0.0
    %139 = vmatprep.subr.mxu0 0.0
    %140 = vmatpush1.msra.mxu0 0.0
    %141 = vmatprep.subr.mxu0 0.0
    %142 = vmatpush1.msra.mxu0 0.0
    %143 = vmatprep.subr.mxu0 0.0
    %144 = vmatpush1.msra.mxu0 0.0
    %145 = vmatprep.subr.mxu0 0.0
    %146 = vmatpush1.msra.mxu0 0.0
    %147 = vmatprep.subr.mxu0 0.0
    %148 = vmatpush1.msra.mxu0 0.0
    %149 = vmatprep.subr.mxu0 0.0
    %150 = vmatpush1.msra.mxu0 0.0
    %151 = vmatprep.subr.mxu0 0.0
    %152 = vmatpush1.msra.mxu0 0.0
    %153 = vmatprep.subr.mxu0 0.0
    %154 = vmatpush1.msra.mxu0 0.0
    %155 = vmatprep.subr.mxu0 0.0
    %156 = vmatpush1.msra.mxu0 0.0
    %157 = vmatprep.subr.mxu0 0.0
    %158 = vmatpush1.msra.mxu0 0.0
    %159 = vmatprep.subr.mxu0 0.0
    %160 = vmatpush1.msra.mxu0 0.0
    %161 = vmatprep.subr.mxu0 0.0
    %162 = vmatpush1.msra.mxu0 0.0
    %163 = vmatprep.subr.mxu0 0.0
    %164 = vmatpush1.msra.mxu0 0.0
    %165 = vmatprep.subr.mxu0 0.0
    %166 = vmatpush1.msra.mxu0 0.0
    %167 = vmatprep.subr.mxu0 0.0
    %168 = vmatpush1.msra.mxu0 0.0
    %169 = vmatprep.subr.mxu0 0.0
    %170 = vmatpush1.msra.mxu0 0.0
    %171 = vmatprep.subr.mxu0 0.0
    %172 = vmatpush1.msra.mxu0 0.0
    %173 = vmatprep.subr.mxu0 0.0
    %174 = vmatpush1.msra.mxu0 0.0
    %175 = vmatprep.subr.mxu0 0.0
    %176 = vmatpush1.msra.mxu0 0.0
    %177 = vmatprep.subr.mxu0 0.0
    %178 = vmatpush1.msra.mxu0 0.0
    %179 = vmatprep.subr.mxu0 0.0
    %180 = vmatpush1.msra.mxu0 0.0
    %181 = vmatprep.subr.mxu0 0.0
    %182 = vmatpush1.msra.mxu0 0.0
    %183 = vmatprep.subr.mxu0 0.0
    %184 = vmatpush1.msra.mxu0 0.0
    %185 = vmatprep.subr.mxu0 0.0
    %186 = vmatpush1.msra.mxu0 0.0
    %187 = vmatprep.subr.mxu0 0.0
    %188 = vmatpush1.msra.mxu0 0.0
    %189 = vmatprep.mubr.f32.mxu0 0.0
    %190 = vmatmul.mubr.f32.gmra.mrb[0].mxu0 %v120
    %v191 = vpop.f32.mrb[0].mxu0
    %v192 = vadd.f32 %v110, %v191
    %v193 = vpop.f32.mrb[0].mxu0
    %v194 = vadd.f32 %v114, %v193
    %195 = vmatprep.mubr.f32.mxu0 0.0
    %196 = vmatmul.mubr.f32.gmra.mrb[0].mxu0 %v123
    %v197 = vpop.f32.mrb[0].mxu0
    %v198 = vadd.f32 %v110, %v197
    %v199 = vpop.f32.mrb[0].mxu0
    %v200 = vadd.f32 %v114, %v199
    %201 = vdwg.mxu0
    %202 = vmatprep.subr.mxu0 0.0
    %203 = vmatpush1.msra.mxu0 %v58
    %204 = vmatprep.subr.mxu0 0.0
    %205 = vmatpush1.msra.mxu0 %v61
    %206 = vmatprep.subr.mxu0 0.0
    %207 = vmatpush1.msra.mxu0 %v64
    %208 = vmatprep.subr.mxu0 0.0
    %209 = vmatpush1.msra.mxu0 %v67
    %210 = vmatprep.subr.mxu0 0.0
    %211 = vmatpush1.msra.mxu0 0.0
    %212 = vmatprep.subr.mxu0 0.0
    %213 = vmatpush1.msra.mxu0 0.0
    %214 = vmatprep.subr.mxu0 0.0
    %215 = vmatpush1.msra.mxu0 0.0
    %216 = vmatprep.subr.mxu0 0.0
    %217 = vmatpush1.msra.mxu0 0.0
    %218 = vmatprep.subr.mxu0 0.0
    %219 = vmatpush1.msra.mxu0 0.0
    %220 = vmatprep.subr.mxu0 0.0
    %221 = vmatpush1.msra.mxu0 0.0
    %222 = vmatprep.subr.mxu0 0.0
    %223 = vmatpush1.msra.mxu0 0.0
    %224 = vmatprep.subr.mxu0 0.0
    %225 = vmatpush1.msra.mxu0 0.0
    %226 = vmatprep.subr.mxu0 0.0
    %227 = vmatpush1.msra.mxu0 0.0
    %228 = vmatprep.subr.mxu0 0.0
    %229 = vmatpush1.msra.mxu0 0.0
    %230 = vmatprep.subr.mxu0 0.0
    %231 = vmatpush1.msra.mxu0 0.0
    %232 = vmatprep.subr.mxu0 0.0
    %233 = vmatpush1.msra.mxu0 0.0
    %234 = vmatprep.subr.mxu0 0.0
    %235 = vmatpush1.msra.mxu0 0.0
    %236 = vmatprep.subr.mxu0 0.0
    %237 = vmatpush1.msra.mxu0 0.0
    %238 = vmatprep.subr.mxu0 0.0
    %239 = vmatpush1.msra.mxu0 0.0
    %240 = vmatprep.subr.mxu0 0.0
    %241 = vmatpush1.msra.mxu0 0.0
    %242 = vmatprep.subr.mxu0 0.0
    %243 = vmatpush1.msra.mxu0 0.0
    %244 = vmatprep.subr.mxu0 0.0
    %245 = vmatpush1.msra.mxu0 0.0
    %246 = vmatprep.subr.mxu0 0.0
    %247 = vmatpush1.msra.mxu0 0.0
    %248 = vmatprep.subr.mxu0 0.0
    %249 = vmatpush1.msra.mxu0 0.0
    %250 = vmatprep.subr.mxu0 0.0
    %251 = vmatpush1.msra.mxu0 0.0
    %252 = vmatprep.subr.mxu0 0.0
    %253 = vmatpush1.msra.mxu0 0.0
    %254 = vmatprep.subr.mxu0 0.0
    %255 = vmatpush1.msra.mxu0 0.0
    %256 = vmatprep.subr.mxu0 0.0
    %257 = vmatpush1.msra.mxu0 0.0
    %258 = vmatprep.subr.mxu0 0.0
    %259 = vmatpush1.msra.mxu0 0.0
    %260 = vmatprep.subr.mxu0 0.0
    %261 = vmatpush1.msra.mxu0 0.0
    %262 = vmatprep.subr.mxu0 0.0
    %263 = vmatpush1.msra.mxu0 0.0
    %264 = vmatprep.subr.mxu0 0.0
    %265 = vmatpush1.msra.mxu0 0.0
    %266 = vmatprep.mubr.f32.mxu0 0.0
    %267 = vmatmul.mubr.f32.gmra.mrb[0].mxu0 %v120
    %v268 = vpop.f32.mrb[0].mxu0
    %v269 = vadd.f32 %v118, %v268
    %v270 = vpop.f32.mrb[0].mxu0
    %271 = vmatprep.mubr.f32.mxu0 0.0
    %272 = vmatmul.mubr.f32.gmra.mrb[0].mxu0 %v123
    %v273 = vpop.f32.mrb[0].mxu0
    %v274 = vadd.f32 %v118, %v273
    %v275 = vpop.f32.mrb[0].mxu0
    %276 = vdwg.mxu0
    %s278 = sor.u32 256, 121
    %279 = vrot.lane.b32.xlu0 %v269, %s278
    %v280 = vpop.permute.xlu0 %279
    %s282 = sor.u32 256, 1
    %283 = vrot.lane.b32.xlu0 %v274, %s282
    %v284 = vpop.permute.xlu0 %283
    %v285 = vlaneseq
    %v286 = vshrl.u32 %v285, 7
    %v287 = vadd.s32 %v286, 8
    %v288 = vlaneseq
    %v289 = vand.u32 %v288, 127
    %v290 = vand.u32 %v286, 4294967288
    %v291 = vand.u32 %v287, 4294967288
    %v292 = vand.u32 %v289, 4294967288
    %vm293 = vcmp.eq.s32.totalorder %v290, %v292
    %vm294 = vcmp.eq.s32.totalorder %v291, %v292
    %vm295 = vcmp.le.s32.totalorder %v289, %v286
    %vm296 = vcmp.le.s32.totalorder %v289, %v287
    %vm297 = vmand %vm293, %vm295
    %vm298 = vmand %vm294, %vm296
    %301 = vrot.lane.b32.xlu0 %v192, 96
    %v302 = vpop.permute.xlu0 %301
    %303 = vrot.lane.b32.xlu0 %v198, 96
    %v304 = vpop.permute.xlu0 %303
    %vm305 = vcmask 64512
    %v306 = vsel %vm305, %v192, 0
    %v308 = vsel %vm305, %v198, 0
    %v310 = vsel %vm305, %v302, 0
    %v312 = vsel %vm305, %v304, 0
    %314 = vmatprep.subr.mxu0 0.0
    %315 = vmatpush1.xpose.msra.mxu0 %v310
    %316 = vmatprep.subr.mxu0 0.0
    %317 = vmatpush1.xpose.msra.mxu0 %v312
    %318 = vmatprep.subr.mxu0 0.0
    %319 = vmatpush1.xpose.msra.mxu0 0.0
    %320 = vmatprep.subr.mxu0 0.0
    %321 = vmatpush1.xpose.msra.mxu0 0.0
    %322 = vmatprep.subr.mxu0 0.0
    %323 = vmatpush1.xpose.msra.mxu0 0.0
    %324 = vmatprep.subr.mxu0 0.0
    %325 = vmatpush1.xpose.msra.mxu0 0.0
    %326 = vmatprep.subr.mxu0 0.0
    %327 = vmatpush1.xpose.msra.mxu0 0.0
    %328 = vmatprep.subr.mxu0 0.0
    %329 = vmatpush1.xpose.msra.mxu0 0.0
    %330 = vmatprep.subr.mxu0 0.0
    %331 = vmatpush1.xpose.msra.mxu0 0.0
    %332 = vmatprep.subr.mxu0 0.0
    %333 = vmatpush1.xpose.msra.mxu0 0.0
    %334 = vmatprep.subr.mxu0 0.0
    %335 = vmatpush1.xpose.msra.mxu0 0.0
    %336 = vmatprep.subr.mxu0 0.0
    %337 = vmatpush1.xpose.msra.mxu0 0.0
    %338 = vmatprep.subr.mxu0 0.0
    %339 = vmatpush1.xpose.msra.mxu0 0.0
    %340 = vmatprep.subr.mxu0 0.0
    %341 = vmatpush1.xpose.msra.mxu0 0.0
    %342 = vmatprep.subr.mxu0 0.0
    %343 = vmatpush1.xpose.msra.mxu0 0.0
    %344 = vmatprep.subr.mxu0 0.0
    %345 = vmatpush1.xpose.msra.mxu0 0.0
    %346 = vmatprep.subr.mxu0 0.0
    %347 = vmatpush1.xpose.msra.mxu0 0.0
    %348 = vmatprep.subr.mxu0 0.0
    %349 = vmatpush1.xpose.msra.mxu0 0.0
    %350 = vmatprep.subr.mxu0 0.0
    %351 = vmatpush1.xpose.msra.mxu0 0.0
    %352 = vmatprep.subr.mxu0 0.0
    %353 = vmatpush1.xpose.msra.mxu0 0.0
    %354 = vmatprep.subr.mxu0 0.0
    %355 = vmatpush1.xpose.msra.mxu0 0.0
    %356 = vmatprep.subr.mxu0 0.0
    %357 = vmatpush1.xpose.msra.mxu0 0.0
    %358 = vmatprep.subr.mxu0 0.0
    %359 = vmatpush1.xpose.msra.mxu0 0.0
    %360 = vmatprep.subr.mxu0 0.0
    %361 = vmatpush1.xpose.msra.mxu0 0.0
    %362 = vmatprep.subr.mxu0 0.0
    %363 = vmatpush1.xpose.msra.mxu0 0.0
    %364 = vmatprep.subr.mxu0 0.0
    %365 = vmatpush1.xpose.msra.mxu0 0.0
    %366 = vmatprep.subr.mxu0 0.0
    %367 = vmatpush1.xpose.msra.mxu0 0.0
    %368 = vmatprep.subr.mxu0 0.0
    %369 = vmatpush1.xpose.msra.mxu0 0.0
    %370 = vmatprep.subr.mxu0 0.0
    %371 = vmatpush1.xpose.msra.mxu0 0.0
    %372 = vmatprep.subr.mxu0 0.0
    %373 = vmatpush1.xpose.msra.mxu0 0.0
    %374 = vmatprep.subr.mxu0 0.0
    %375 = vmatpush1.xpose.msra.mxu0 0.0
    %376 = vmatprep.subr.mxu0 0.0
    %377 = vmatpush1.xpose.msra.mxu0 0.0
    %378 = vmatprep.mubr.f32.mxu0 0.0
    %379 = vmatmul.mubr.f32.gmra.mrb[0].mxu0 %v306
    %v380 = vpop.f32.mrb[0].mxu0
    %v381 = vadd.f32 %v280, %v380
    %v382 = vpop.f32.mrb[0].mxu0
    %383 = vmatprep.mubr.f32.mxu0 0.0
    %384 = vmatmul.mubr.f32.gmra.mrb[0].mxu0 %v308
    %v385 = vpop.f32.mrb[0].mxu0
    %v386 = vadd.f32 %v284, %v385
    %v387 = vpop.f32.mrb[0].mxu0
    %388 = vdwg.mxu0
    %v389 = vsel %vm297, %v381, -1e+30
    %v390 = vsel %vm298, %v386, -1e+30
    %vm391 = vcmask 130048
    %v392 = vsel %vm391, %v389, -inf
    %393 = vmax.xlane.f32.xlu0 %v392
    %v394 = vpop.xlane.xlu0 %393
    %v395 = vsel %vm391, %v390, -inf
    %396 = vmax.xlane.f32.xlu0 %v395
    %v397 = vpop.xlane.xlu0 %396
    %v398 = vsub.f32 %v389, %v394
    %v399 = vsub.f32 %v390, %v397
    %v400 = vmul.f32 %v398, 1.442695
    %v401 = vpow.pop %v400
    %v402 = vmul.f32 %v399, 1.442695
    %v403 = vpow.pop %v402
    %v404 = vsel %vm391, %v401, 0.0
    %405 = vadd.xlane.f32.xlu0 %v404
    %v406 = vpop.xlane.xlu0 %405
    %v407 = vsel %vm391, %v403, 0.0
    %408 = vadd.xlane.f32.xlu0 %v407
    %v409 = vpop.xlane.xlu0 %408
    %v410 = vrcp.pop %v406
    %v411 = vmul.f32 %v401, %v410
    %v412 = vrcp.pop %v409
    %v413 = vmul.f32 %v403, %v412
    %414 = vrot.lane.b32.xlu0 %v192, 120
    %v415 = vpop.permute.xlu0 %414
    %416 = vrot.lane.b32.xlu0 %v198, 120
    %v417 = vpop.permute.xlu0 %416
    %418 = vrot.lane.b32.xlu0 %v192, 88
    %v419 = vpop.permute.xlu0 %418
    %420 = vrot.lane.b32.xlu0 %v198, 88
    %v421 = vpop.permute.xlu0 %420
    %424 = vrot.lane.b32.xlu0 %v280, 112
    %v425 = vpop.permute.xlu0 %424
    %426 = vrot.lane.b32.xlu0 %v284, 112
    %v427 = vpop.permute.xlu0 %426
    %v430 = vsel %vm305, %v415, 0
    %v432 = vsel %vm305, %v417, 0
    %v434 = vsel %vm305, %v419, 0
    %v436 = vsel %vm305, %v421, 0
    %438 = vmatprep.subr.mxu0 0.0
    %439 = vmatpush1.xpose.msra.mxu0 %v434
    %440 = vmatprep.subr.mxu0 0.0
    %441 = vmatpush1.xpose.msra.mxu0 %v436
    %442 = vmatprep.subr.mxu0 0.0
    %443 = vmatpush1.xpose.msra.mxu0 0.0
    %444 = vmatprep.subr.mxu0 0.0
    %445 = vmatpush1.xpose.msra.mxu0 0.0
    %446 = vmatprep.subr.mxu0 0.0
    %447 = vmatpush1.xpose.msra.mxu0 0.0
    %448 = vmatprep.subr.mxu0 0.0
    %449 = vmatpush1.xpose.msra.mxu0 0.0
    %450 = vmatprep.subr.mxu0 0.0
    %451 = vmatpush1.xpose.msra.mxu0 0.0
    %452 = vmatprep.subr.mxu0 0.0
    %453 = vmatpush1.xpose.msra.mxu0 0.0
    %454 = vmatprep.subr.mxu0 0.0
    %455 = vmatpush1.xpose.msra.mxu0 0.0
    %456 = vmatprep.subr.mxu0 0.0
    %457 = vmatpush1.xpose.msra.mxu0 0.0
    %458 = vmatprep.subr.mxu0 0.0
    %459 = vmatpush1.xpose.msra.mxu0 0.0
    %460 = vmatprep.subr.mxu0 0.0
    %461 = vmatpush1.xpose.msra.mxu0 0.0
    %462 = vmatprep.subr.mxu0 0.0
    %463 = vmatpush1.xpose.msra.mxu0 0.0
    %464 = vmatprep.subr.mxu0 0.0
    %465 = vmatpush1.xpose.msra.mxu0 0.0
    %466 = vmatprep.subr.mxu0 0.0
    %467 = vmatpush1.xpose.msra.mxu0 0.0
    %468 = vmatprep.subr.mxu0 0.0
    %469 = vmatpush1.xpose.msra.mxu0 0.0
    %470 = vmatprep.subr.mxu0 0.0
    %471 = vmatpush1.xpose.msra.mxu0 0.0
    %472 = vmatprep.subr.mxu0 0.0
    %473 = vmatpush1.xpose.msra.mxu0 0.0
    %474 = vmatprep.subr.mxu0 0.0
    %475 = vmatpush1.xpose.msra.mxu0 0.0
    %476 = vmatprep.subr.mxu0 0.0
    %477 = vmatpush1.xpose.msra.mxu0 0.0
    %478 = vmatprep.subr.mxu0 0.0
    %479 = vmatpush1.xpose.msra.mxu0 0.0
    %480 = vmatprep.subr.mxu0 0.0
    %481 = vmatpush1.xpose.msra.mxu0 0.0
    %482 = vmatprep.subr.mxu0 0.0
    %483 = vmatpush1.xpose.msra.mxu0 0.0
    %484 = vmatprep.subr.mxu0 0.0
    %485 = vmatpush1.xpose.msra.mxu0 0.0
    %486 = vmatprep.subr.mxu0 0.0
    %487 = vmatpush1.xpose.msra.mxu0 0.0
    %488 = vmatprep.subr.mxu0 0.0
    %489 = vmatpush1.xpose.msra.mxu0 0.0
    %490 = vmatprep.subr.mxu0 0.0
    %491 = vmatpush1.xpose.msra.mxu0 0.0
    %492 = vmatprep.subr.mxu0 0.0
    %493 = vmatpush1.xpose.msra.mxu0 0.0
    %494 = vmatprep.subr.mxu0 0.0
    %495 = vmatpush1.xpose.msra.mxu0 0.0
    %496 = vmatprep.subr.mxu0 0.0
    %497 = vmatpush1.xpose.msra.mxu0 0.0
    %498 = vmatprep.subr.mxu0 0.0
    %499 = vmatpush1.xpose.msra.mxu0 0.0
    %500 = vmatprep.subr.mxu0 0.0
    %501 = vmatpush1.xpose.msra.mxu0 0.0
    %502 = vmatprep.mubr.f32.mxu0 0.0
    %503 = vmatmul.mubr.f32.gmra.mrb[0].mxu0 %v430
    %v504 = vpop.f32.mrb[0].mxu0
    %v505 = vadd.f32 %v425, %v504
    %v506 = vpop.f32.mrb[0].mxu0
    %507 = vmatprep.mubr.f32.mxu0 0.0
    %508 = vmatmul.mubr.f32.gmra.mrb[0].mxu0 %v432
    %v509 = vpop.f32.mrb[0].mxu0
    %v510 = vadd.f32 %v427, %v509
    %v511 = vpop.f32.mrb[0].mxu0
    %512 = vdwg.mxu0
    %v513 = vsel %vm297, %v505, -1e+30
    %v514 = vsel %vm298, %v510, -1e+30
    %v515 = vsel %vm391, %v513, -inf
    %516 = vmax.xlane.f32.xlu0 %v515
    %v517 = vpop.xlane.xlu0 %516
    %v518 = vsel %vm391, %v514, -inf
    %519 = vmax.xlane.f32.xlu0 %v518
    %v520 = vpop.xlane.xlu0 %519
    %v521 = vsub.f32 %v513, %v517
    %v522 = vsub.f32 %v514, %v520
    %v523 = vmul.f32 %v521, 1.442695
    %v524 = vpow.pop %v523
    %v525 = vmul.f32 %v522, 1.442695
    %v526 = vpow.pop %v525
    %v527 = vsel %vm391, %v524, 0.0
    %528 = vadd.xlane.f32.xlu0 %v527
    %v529 = vpop.xlane.xlu0 %528
    %v530 = vsel %vm391, %v526, 0.0
    %531 = vadd.xlane.f32.xlu0 %v530
    %v532 = vpop.xlane.xlu0 %531
    %v533 = vrcp.pop %v529
    %v534 = vmul.f32 %v524, %v533
    %v535 = vrcp.pop %v532
    %v536 = vmul.f32 %v526, %v535
    %537 = vrot.lane.b32.xlu0 %v192, 32
    %v538 = vpop.permute.xlu0 %537
    %539 = vrot.lane.b32.xlu0 %v198, 32
    %v540 = vpop.permute.xlu0 %539
    %v544 = vsel %vm391, %v534, 0
    %v547 = vsel %vm391, %v536, 0
    %549 = vmatprep.subr.mxu0 0.0
    %550 = vmatpush1.msra.mxu0 %v538
    %551 = vmatprep.subr.mxu0 0.0
    %552 = vmatpush1.msra.mxu0 %v540
    %553 = vmatprep.subr.mxu0 0.0
    %554 = vmatpush1.msra.mxu0 0.0
    %555 = vmatprep.subr.mxu0 0.0
    %556 = vmatpush1.msra.mxu0 0.0
    %557 = vmatprep.subr.mxu0 0.0
    %558 = vmatpush1.msra.mxu0 0.0
    %559 = vmatprep.subr.mxu0 0.0
    %560 = vmatpush1.msra.mxu0 0.0
    %561 = vmatprep.subr.mxu0 0.0
    %562 = vmatpush1.msra.mxu0 0.0
    %563 = vmatprep.subr.mxu0 0.0
    %564 = vmatpush1.msra.mxu0 0.0
    %565 = vmatprep.subr.mxu0 0.0
    %566 = vmatpush1.msra.mxu0 0.0
    %567 = vmatprep.subr.mxu0 0.0
    %568 = vmatpush1.msra.mxu0 0.0
    %569 = vmatprep.subr.mxu0 0.0
    %570 = vmatpush1.msra.mxu0 0.0
    %571 = vmatprep.subr.mxu0 0.0
    %572 = vmatpush1.msra.mxu0 0.0
    %573 = vmatprep.subr.mxu0 0.0
    %574 = vmatpush1.msra.mxu0 0.0
    %575 = vmatprep.subr.mxu0 0.0
    %576 = vmatpush1.msra.mxu0 0.0
    %577 = vmatprep.subr.mxu0 0.0
    %578 = vmatpush1.msra.mxu0 0.0
    %579 = vmatprep.subr.mxu0 0.0
    %580 = vmatpush1.msra.mxu0 0.0
    %581 = vmatprep.subr.mxu0 0.0
    %582 = vmatpush1.msra.mxu0 0.0
    %583 = vmatprep.subr.mxu0 0.0
    %584 = vmatpush1.msra.mxu0 0.0
    %585 = vmatprep.subr.mxu0 0.0
    %586 = vmatpush1.msra.mxu0 0.0
    %587 = vmatprep.subr.mxu0 0.0
    %588 = vmatpush1.msra.mxu0 0.0
    %589 = vmatprep.subr.mxu0 0.0
    %590 = vmatpush1.msra.mxu0 0.0
    %591 = vmatprep.subr.mxu0 0.0
    %592 = vmatpush1.msra.mxu0 0.0
    %593 = vmatprep.subr.mxu0 0.0
    %594 = vmatpush1.msra.mxu0 0.0
    %595 = vmatprep.subr.mxu0 0.0
    %596 = vmatpush1.msra.mxu0 0.0
    %597 = vmatprep.subr.mxu0 0.0
    %598 = vmatpush1.msra.mxu0 0.0
    %599 = vmatprep.subr.mxu0 0.0
    %600 = vmatpush1.msra.mxu0 0.0
    %601 = vmatprep.subr.mxu0 0.0
    %602 = vmatpush1.msra.mxu0 0.0
    %603 = vmatprep.subr.mxu0 0.0
    %604 = vmatpush1.msra.mxu0 0.0
    %605 = vmatprep.subr.mxu0 0.0
    %606 = vmatpush1.msra.mxu0 0.0
    %607 = vmatprep.subr.mxu0 0.0
    %608 = vmatpush1.msra.mxu0 0.0
    %609 = vmatprep.subr.mxu0 0.0
    %610 = vmatpush1.msra.mxu0 0.0
    %611 = vmatprep.subr.mxu0 0.0
    %612 = vmatpush1.msra.mxu0 0.0
    %613 = vmatprep.mubr.f32.mxu0 0.0
    %614 = vmatmul.mubr.f32.gmra.mrb[0].mxu0 %v544
    %v615 = vpop.f32.mrb[0].mxu0
    %v616 = vadd.f32 0.0, %v615
    %v617 = vpop.f32.mrb[0].mxu0
    %618 = vmatprep.mubr.f32.mxu0 0.0
    %619 = vmatmul.mubr.f32.gmra.mrb[0].mxu0 %v547
    %v620 = vpop.f32.mrb[0].mxu0
    %v621 = vadd.f32 0.0, %v620
    %v622 = vpop.f32.mrb[0].mxu0
    %623 = vdwg.mxu0
    %624 = vrot.lane.b32.xlu0 %v192, 64
    %v625 = vpop.permute.xlu0 %624
    %626 = vrot.lane.b32.xlu0 %v198, 64
    %v627 = vpop.permute.xlu0 %626
    %v631 = vsel %vm391, %v411, 0
    %v634 = vsel %vm391, %v413, 0
    %636 = vmatprep.subr.mxu0 0.0
    %637 = vmatpush1.msra.mxu0 %v625
    %638 = vmatprep.subr.mxu0 0.0
    %639 = vmatpush1.msra.mxu0 %v627
    %640 = vmatprep.subr.mxu0 0.0
    %641 = vmatpush1.msra.mxu0 0.0
    %642 = vmatprep.subr.mxu0 0.0
    %643 = vmatpush1.msra.mxu0 0.0
    %644 = vmatprep.subr.mxu0 0.0
    %645 = vmatpush1.msra.mxu0 0.0
    %646 = vmatprep.subr.mxu0 0.0
    %647 = vmatpush1.msra.mxu0 0.0
    %648 = vmatprep.subr.mxu0 0.0
    %649 = vmatpush1.msra.mxu0 0.0
    %650 = vmatprep.subr.mxu0 0.0
    %651 = vmatpush1.msra.mxu0 0.0
    %652 = vmatprep.subr.mxu0 0.0
    %653 = vmatpush1.msra.mxu0 0.0
    %654 = vmatprep.subr.mxu0 0.0
    %655 = vmatpush1.msra.mxu0 0.0
    %656 = vmatprep.subr.mxu0 0.0
    %657 = vmatpush1.msra.mxu0 0.0
    %658 = vmatprep.subr.mxu0 0.0
    %659 = vmatpush1.msra.mxu0 0.0
    %660 = vmatprep.subr.mxu0 0.0
    %661 = vmatpush1.msra.mxu0 0.0
    %662 = vmatprep.subr.mxu0 0.0
    %663 = vmatpush1.msra.mxu0 0.0
    %664 = vmatprep.subr.mxu0 0.0
    %665 = vmatpush1.msra.mxu0 0.0
    %666 = vmatprep.subr.mxu0 0.0
    %667 = vmatpush1.msra.mxu0 0.0
    %668 = vmatprep.subr.mxu0 0.0
    %669 = vmatpush1.msra.mxu0 0.0
    %670 = vmatprep.subr.mxu0 0.0
    %671 = vmatpush1.msra.mxu0 0.0
    %672 = vmatprep.subr.mxu0 0.0
    %673 = vmatpush1.msra.mxu0 0.0
    %674 = vmatprep.subr.mxu0 0.0
    %675 = vmatpush1.msra.mxu0 0.0
    %676 = vmatprep.subr.mxu0 0.0
    %677 = vmatpush1.msra.mxu0 0.0
    %678 = vmatprep.subr.mxu0 0.0
    %679 = vmatpush1.msra.mxu0 0.0
    %680 = vmatprep.subr.mxu0 0.0
    %681 = vmatpush1.msra.mxu0 0.0
    %682 = vmatprep.subr.mxu0 0.0
    %683 = vmatpush1.msra.mxu0 0.0
    %684 = vmatprep.subr.mxu0 0.0
    %685 = vmatpush1.msra.mxu0 0.0
    %686 = vmatprep.subr.mxu0 0.0
    %687 = vmatpush1.msra.mxu0 0.0
    %688 = vmatprep.subr.mxu0 0.0
    %689 = vmatpush1.msra.mxu0 0.0
    %690 = vmatprep.subr.mxu0 0.0
    %691 = vmatpush1.msra.mxu0 0.0
    %692 = vmatprep.subr.mxu0 0.0
    %693 = vmatpush1.msra.mxu0 0.0
    %694 = vmatprep.subr.mxu0 0.0
    %695 = vmatpush1.msra.mxu0 0.0
    %696 = vmatprep.subr.mxu0 0.0
    %697 = vmatpush1.msra.mxu0 0.0
    %698 = vmatprep.subr.mxu0 0.0
    %699 = vmatpush1.msra.mxu0 0.0
    %700 = vmatprep.mubr.f32.mxu0 0.0
    %701 = vmatmul.mubr.f32.gmra.mrb[0].mxu0 %v631
    %v702 = vpop.f32.mrb[0].mxu0
    %v703 = vadd.f32 %v616, %v702
    %v704 = vpop.f32.mrb[0].mxu0
    %705 = vmatprep.mubr.f32.mxu0 0.0
    %706 = vmatmul.mubr.f32.gmra.mrb[0].mxu0 %v634
    %v707 = vpop.f32.mrb[0].mxu0
    %v708 = vadd.f32 %v621, %v707
    %v709 = vpop.f32.mrb[0].mxu0
    %710 = vdwg.mxu0
    %711 = vrot.lane.b32.xlu0 %v192, 112
    %v712 = vpop.permute.xlu0 %711
    %713 = vrot.lane.b32.xlu0 %v198, 112
    %v714 = vpop.permute.xlu0 %713
    %715 = vrot.lane.b32.xlu0 %v192, 80
    %v716 = vpop.permute.xlu0 %715
    %717 = vrot.lane.b32.xlu0 %v198, 80
    %v718 = vpop.permute.xlu0 %717
    %719 = vrot.lane.b32.xlu0 %v280, 96
    %v720 = vpop.permute.xlu0 %719
    %721 = vrot.lane.b32.xlu0 %v284, 96
    %v722 = vpop.permute.xlu0 %721
    %v725 = vsel %vm305, %v712, 0
    %v727 = vsel %vm305, %v714, 0
    %v729 = vsel %vm305, %v716, 0
    %v731 = vsel %vm305, %v718, 0
    %733 = vmatprep.subr.mxu0 0.0
    %734 = vmatpush1.xpose.msra.mxu0 %v729
    %735 = vmatprep.subr.mxu0 0.0
    %736 = vmatpush1.xpose.msra.mxu0 %v731
    %737 = vmatprep.subr.mxu0 0.0
    %738 = vmatpush1.xpose.msra.mxu0 0.0
    %739 = vmatprep.subr.mxu0 0.0
    %740 = vmatpush1.xpose.msra.mxu0 0.0
    %741 = vmatprep.subr.mxu0 0.0
    %742 = vmatpush1.xpose.msra.mxu0 0.0
    %743 = vmatprep.subr.mxu0 0.0
    %744 = vmatpush1.xpose.msra.mxu0 0.0
    %745 = vmatprep.subr.mxu0 0.0
    %746 = vmatpush1.xpose.msra.mxu0 0.0
    %747 = vmatprep.subr.mxu0 0.0
    %748 = vmatpush1.xpose.msra.mxu0 0.0
    %749 = vmatprep.subr.mxu0 0.0
    %750 = vmatpush1.xpose.msra.mxu0 0.0
    %751 = vmatprep.subr.mxu0 0.0
    %752 = vmatpush1.xpose.msra.mxu0 0.0
    %753 = vmatprep.subr.mxu0 0.0
    %754 = vmatpush1.xpose.msra.mxu0 0.0
    %755 = vmatprep.subr.mxu0 0.0
    %756 = vmatpush1.xpose.msra.mxu0 0.0
    %757 = vmatprep.subr.mxu0 0.0
    %758 = vmatpush1.xpose.msra.mxu0 0.0
    %759 = vmatprep.subr.mxu0 0.0
    %760 = vmatpush1.xpose.msra.mxu0 0.0
    %761 = vmatprep.subr.mxu0 0.0
    %762 = vmatpush1.xpose.msra.mxu0 0.0
    %763 = vmatprep.subr.mxu0 0.0
    %764 = vmatpush1.xpose.msra.mxu0 0.0
    %765 = vmatprep.subr.mxu0 0.0
    %766 = vmatpush1.xpose.msra.mxu0 0.0
    %767 = vmatprep.subr.mxu0 0.0
    %768 = vmatpush1.xpose.msra.mxu0 0.0
    %769 = vmatprep.subr.mxu0 0.0
    %770 = vmatpush1.xpose.msra.mxu0 0.0
    %771 = vmatprep.subr.mxu0 0.0
    %772 = vmatpush1.xpose.msra.mxu0 0.0
    %773 = vmatprep.subr.mxu0 0.0
    %774 = vmatpush1.xpose.msra.mxu0 0.0
    %775 = vmatprep.subr.mxu0 0.0
    %776 = vmatpush1.xpose.msra.mxu0 0.0
    %777 = vmatprep.subr.mxu0 0.0
    %778 = vmatpush1.xpose.msra.mxu0 0.0
    %779 = vmatprep.subr.mxu0 0.0
    %780 = vmatpush1.xpose.msra.mxu0 0.0
    %781 = vmatprep.subr.mxu0 0.0
    %782 = vmatpush1.xpose.msra.mxu0 0.0
    %783 = vmatprep.subr.mxu0 0.0
    %784 = vmatpush1.xpose.msra.mxu0 0.0
    %785 = vmatprep.subr.mxu0 0.0
    %786 = vmatpush1.xpose.msra.mxu0 0.0
    %787 = vmatprep.subr.mxu0 0.0
    %788 = vmatpush1.xpose.msra.mxu0 0.0
    %789 = vmatprep.subr.mxu0 0.0
    %790 = vmatpush1.xpose.msra.mxu0 0.0
    %791 = vmatprep.subr.mxu0 0.0
    %792 = vmatpush1.xpose.msra.mxu0 0.0
    %793 = vmatprep.subr.mxu0 0.0
    %794 = vmatpush1.xpose.msra.mxu0 0.0
    %795 = vmatprep.subr.mxu0 0.0
    %796 = vmatpush1.xpose.msra.mxu0 0.0
    %797 = vmatprep.mubr.f32.mxu0 0.0
    %798 = vmatmul.mubr.f32.gmra.mrb[0].mxu0 %v725
    %v799 = vpop.f32.mrb[0].mxu0
    %v800 = vadd.f32 %v720, %v799
    %v801 = vpop.f32.mrb[0].mxu0
    %802 = vmatprep.mubr.f32.mxu0 0.0
    %803 = vmatmul.mubr.f32.gmra.mrb[0].mxu0 %v727
    %v804 = vpop.f32.mrb[0].mxu0
    %v805 = vadd.f32 %v722, %v804
    %v806 = vpop.f32.mrb[0].mxu0
    %807 = vdwg.mxu0
    %v808 = vsel %vm297, %v800, -1e+30
    %v809 = vsel %vm298, %v805, -1e+30
    %v810 = vsel %vm391, %v808, -inf
    %811 = vmax.xlane.f32.xlu0 %v810
    %v812 = vpop.xlane.xlu0 %811
    %v813 = vsel %vm391, %v809, -inf
    %814 = vmax.xlane.f32.xlu0 %v813
    %v815 = vpop.xlane.xlu0 %814
    %v816 = vsub.f32 %v808, %v812
    %v817 = vsub.f32 %v809, %v815
    %v818 = vmul.f32 %v816, 1.442695
    %v819 = vpow.pop %v818
    %v820 = vmul.f32 %v817, 1.442695
    %v821 = vpow.pop %v820
    %v822 = vsel %vm391, %v819, 0.0
    %823 = vadd.xlane.f32.xlu0 %v822
    %v824 = vpop.xlane.xlu0 %823
    %v825 = vsel %vm391, %v821, 0.0
    %826 = vadd.xlane.f32.xlu0 %v825
    %v827 = vpop.xlane.xlu0 %826
    %v828 = vrcp.pop %v824
    %v829 = vmul.f32 %v819, %v828
    %v830 = vrcp.pop %v827
    %v831 = vmul.f32 %v821, %v830
    %v833 = vsel %vm391, %v829, 0
    %v836 = vsel %vm391, %v831, 0
    %838 = vmatprep.subr.mxu0 0.0
    %839 = vmatpush1.msra.mxu0 %v194
    %840 = vmatprep.subr.mxu0 0.0
    %841 = vmatpush1.msra.mxu0 %v200
    %842 = vmatprep.subr.mxu0 0.0
    %843 = vmatpush1.msra.mxu0 0.0
    %844 = vmatprep.subr.mxu0 0.0
    %845 = vmatpush1.msra.mxu0 0.0
    %846 = vmatprep.subr.mxu0 0.0
    %847 = vmatpush1.msra.mxu0 0.0
    %848 = vmatprep.subr.mxu0 0.0
    %849 = vmatpush1.msra.mxu0 0.0
    %850 = vmatprep.subr.mxu0 0.0
    %851 = vmatpush1.msra.mxu0 0.0
    %852 = vmatprep.subr.mxu0 0.0
    %853 = vmatpush1.msra.mxu0 0.0
    %854 = vmatprep.subr.mxu0 0.0
    %855 = vmatpush1.msra.mxu0 0.0
    %856 = vmatprep.subr.mxu0 0.0
    %857 = vmatpush1.msra.mxu0 0.0
    %858 = vmatprep.subr.mxu0 0.0
    %859 = vmatpush1.msra.mxu0 0.0
    %860 = vmatprep.subr.mxu0 0.0
    %861 = vmatpush1.msra.mxu0 0.0
    %862 = vmatprep.subr.mxu0 0.0
    %863 = vmatpush1.msra.mxu0 0.0
    %864 = vmatprep.subr.mxu0 0.0
    %865 = vmatpush1.msra.mxu0 0.0
    %866 = vmatprep.subr.mxu0 0.0
    %867 = vmatpush1.msra.mxu0 0.0
    %868 = vmatprep.subr.mxu0 0.0
    %869 = vmatpush1.msra.mxu0 0.0
    %870 = vmatprep.subr.mxu0 0.0
    %871 = vmatpush1.msra.mxu0 0.0
    %872 = vmatprep.subr.mxu0 0.0
    %873 = vmatpush1.msra.mxu0 0.0
    %874 = vmatprep.subr.mxu0 0.0
    %875 = vmatpush1.msra.mxu0 0.0
    %876 = vmatprep.subr.mxu0 0.0
    %877 = vmatpush1.msra.mxu0 0.0
    %878 = vmatprep.subr.mxu0 0.0
    %879 = vmatpush1.msra.mxu0 0.0
    %880 = vmatprep.subr.mxu0 0.0
    %881 = vmatpush1.msra.mxu0 0.0
    %882 = vmatprep.subr.mxu0 0.0
    %883 = vmatpush1.msra.mxu0 0.0
    %884 = vmatprep.subr.mxu0 0.0
    %885 = vmatpush1.msra.mxu0 0.0
    %886 = vmatprep.subr.mxu0 0.0
    %887 = vmatpush1.msra.mxu0 0.0
    %888 = vmatprep.subr.mxu0 0.0
    %889 = vmatpush1.msra.mxu0 0.0
    %890 = vmatprep.subr.mxu0 0.0
    %891 = vmatpush1.msra.mxu0 0.0
    %892 = vmatprep.subr.mxu0 0.0
    %893 = vmatpush1.msra.mxu0 0.0
    %894 = vmatprep.subr.mxu0 0.0
    %895 = vmatpush1.msra.mxu0 0.0
    %896 = vmatprep.subr.mxu0 0.0
    %897 = vmatpush1.msra.mxu0 0.0
    %898 = vmatprep.subr.mxu0 0.0
    %899 = vmatpush1.msra.mxu0 0.0
    %900 = vmatprep.subr.mxu0 0.0
    %901 = vmatpush1.msra.mxu0 0.0
    %902 = vmatprep.mubr.f32.mxu0 0.0
    %903 = vmatmul.mubr.f32.gmra.mrb[0].mxu0 %v833
    %v904 = vpop.f32.mrb[0].mxu0
    %v905 = vadd.f32 0.0, %v904
    %v906 = vpop.f32.mrb[0].mxu0
    %907 = vmatprep.mubr.f32.mxu0 0.0
    %908 = vmatmul.mubr.f32.gmra.mrb[0].mxu0 %v836
    %v909 = vpop.f32.mrb[0].mxu0
    %v910 = vadd.f32 0.0, %v909
    %v911 = vpop.f32.mrb[0].mxu0
    %912 = vdwg.mxu0
    %v913 = vadd.f32 %v703, %v905
    %v914 = vadd.f32 %v708, %v910
    %915 = vrot.lane.b32.xlu0 %v192, 104
    %v916 = vpop.permute.xlu0 %915
    %917 = vrot.lane.b32.xlu0 %v198, 104
    %v918 = vpop.permute.xlu0 %917
    %919 = vrot.lane.b32.xlu0 %v192, 72
    %v920 = vpop.permute.xlu0 %919
    %921 = vrot.lane.b32.xlu0 %v198, 72
    %v922 = vpop.permute.xlu0 %921
    %923 = vrot.lane.b32.xlu0 %v280, 80
    %v924 = vpop.permute.xlu0 %923
    %925 = vrot.lane.b32.xlu0 %v284, 80
    %v926 = vpop.permute.xlu0 %925
    %v929 = vsel %vm305, %v916, 0
    %v931 = vsel %vm305, %v918, 0
    %v933 = vsel %vm305, %v920, 0
    %v935 = vsel %vm305, %v922, 0
    %937 = vmatprep.subr.mxu0 0.0
    %938 = vmatpush1.xpose.msra.mxu0 %v933
    %939 = vmatprep.subr.mxu0 0.0
    %940 = vmatpush1.xpose.msra.mxu0 %v935
    %941 = vmatprep.subr.mxu0 0.0
    %942 = vmatpush1.xpose.msra.mxu0 0.0
    %943 = vmatprep.subr.mxu0 0.0
    %944 = vmatpush1.xpose.msra.mxu0 0.0
    %945 = vmatprep.subr.mxu0 0.0
    %946 = vmatpush1.xpose.msra.mxu0 0.0
    %947 = vmatprep.subr.mxu0 0.0
    %948 = vmatpush1.xpose.msra.mxu0 0.0
    %949 = vmatprep.subr.mxu0 0.0
    %950 = vmatpush1.xpose.msra.mxu0 0.0
    %951 = vmatprep.subr.mxu0 0.0
    %952 = vmatpush1.xpose.msra.mxu0 0.0
    %953 = vmatprep.subr.mxu0 0.0
    %954 = vmatpush1.xpose.msra.mxu0 0.0
    %955 = vmatprep.subr.mxu0 0.0
    %956 = vmatpush1.xpose.msra.mxu0 0.0
    %957 = vmatprep.subr.mxu0 0.0
    %958 = vmatpush1.xpose.msra.mxu0 0.0
    %959 = vmatprep.subr.mxu0 0.0
    %960 = vmatpush1.xpose.msra.mxu0 0.0
    %961 = vmatprep.subr.mxu0 0.0
    %962 = vmatpush1.xpose.msra.mxu0 0.0
    %963 = vmatprep.subr.mxu0 0.0
    %964 = vmatpush1.xpose.msra.mxu0 0.0
    %965 = vmatprep.subr.mxu0 0.0
    %966 = vmatpush1.xpose.msra.mxu0 0.0
    %967 = vmatprep.subr.mxu0 0.0
    %968 = vmatpush1.xpose.msra.mxu0 0.0
    %969 = vmatprep.subr.mxu0 0.0
    %970 = vmatpush1.xpose.msra.mxu0 0.0
    %971 = vmatprep.subr.mxu0 0.0
    %972 = vmatpush1.xpose.msra.mxu0 0.0
    %973 = vmatprep.subr.mxu0 0.0
    %974 = vmatpush1.xpose.msra.mxu0 0.0
    %975 = vmatprep.subr.mxu0 0.0
    %976 = vmatpush1.xpose.msra.mxu0 0.0
    %977 = vmatprep.subr.mxu0 0.0
    %978 = vmatpush1.xpose.msra.mxu0 0.0
    %979 = vmatprep.subr.mxu0 0.0
    %980 = vmatpush1.xpose.msra.mxu0 0.0
    %981 = vmatprep.subr.mxu0 0.0
    %982 = vmatpush1.xpose.msra.mxu0 0.0
    %983 = vmatprep.subr.mxu0 0.0
    %984 = vmatpush1.xpose.msra.mxu0 0.0
    %985 = vmatprep.subr.mxu0 0.0
    %986 = vmatpush1.xpose.msra.mxu0 0.0
    %987 = vmatprep.subr.mxu0 0.0
    %988 = vmatpush1.xpose.msra.mxu0 0.0
    %989 = vmatprep.subr.mxu0 0.0
    %990 = vmatpush1.xpose.msra.mxu0 0.0
    %991 = vmatprep.subr.mxu0 0.0
    %992 = vmatpush1.xpose.msra.mxu0 0.0
    %993 = vmatprep.subr.mxu0 0.0
    %994 = vmatpush1.xpose.msra.mxu0 0.0
    %995 = vmatprep.subr.mxu0 0.0
    %996 = vmatpush1.xpose.msra.mxu0 0.0
    %997 = vmatprep.subr.mxu0 0.0
    %998 = vmatpush1.xpose.msra.mxu0 0.0
    %999 = vmatprep.subr.mxu0 0.0
    %1000 = vmatpush1.xpose.msra.mxu0 0.0
    %1001 = vmatprep.mubr.f32.mxu0 0.0
    %1002 = vmatmul.mubr.f32.gmra.mrb[0].mxu0 %v929
    %v1003 = vpop.f32.mrb[0].mxu0
    %v1004 = vadd.f32 %v924, %v1003
    %v1005 = vpop.f32.mrb[0].mxu0
    %1006 = vmatprep.mubr.f32.mxu0 0.0
    %1007 = vmatmul.mubr.f32.gmra.mrb[0].mxu0 %v931
    %v1008 = vpop.f32.mrb[0].mxu0
    %v1009 = vadd.f32 %v926, %v1008
    %v1010 = vpop.f32.mrb[0].mxu0
    %1011 = vdwg.mxu0
    %v1012 = vsel %vm297, %v1004, -1e+30
    %v1013 = vsel %vm298, %v1009, -1e+30
    %v1014 = vsel %vm391, %v1012, -inf
    %1015 = vmax.xlane.f32.xlu0 %v1014
    %v1016 = vpop.xlane.xlu0 %1015
    %v1017 = vsel %vm391, %v1013, -inf
    %1018 = vmax.xlane.f32.xlu0 %v1017
    %v1019 = vpop.xlane.xlu0 %1018
    %v1020 = vsub.f32 %v1012, %v1016
    %v1021 = vsub.f32 %v1013, %v1019
    %v1022 = vmul.f32 %v1020, 1.442695
    %v1023 = vpow.pop %v1022
    %v1024 = vmul.f32 %v1021, 1.442695
    %v1025 = vpow.pop %v1024
    %v1026 = vsel %vm391, %v1023, 0.0
    %1027 = vadd.xlane.f32.xlu0 %v1026
    %v1028 = vpop.xlane.xlu0 %1027
    %v1029 = vsel %vm391, %v1025, 0.0
    %1030 = vadd.xlane.f32.xlu0 %v1029
    %v1031 = vpop.xlane.xlu0 %1030
    %v1032 = vrcp.pop %v1028
    %v1033 = vmul.f32 %v1023, %v1032
    %v1034 = vrcp.pop %v1031
    %v1035 = vmul.f32 %v1025, %v1034
    %1038 = vrot.lane.b32.xlu0 %v194, 96
    %v1039 = vpop.permute.xlu0 %1038
    %1040 = vrot.lane.b32.xlu0 %v200, 96
    %v1041 = vpop.permute.xlu0 %1040
    %v1045 = vsel %vm391, %v1033, 0
    %v1048 = vsel %vm391, %v1035, 0
    %1050 = vmatprep.subr.mxu0 0.0
    %1051 = vmatpush1.msra.mxu0 %v1039
    %1052 = vmatprep.subr.mxu0 0.0
    %1053 = vmatpush1.msra.mxu0 %v1041
    %1054 = vmatprep.subr.mxu0 0.0
    %1055 = vmatpush1.msra.mxu0 0.0
    %1056 = vmatprep.subr.mxu0 0.0
    %1057 = vmatpush1.msra.mxu0 0.0
    %1058 = vmatprep.subr.mxu0 0.0
    %1059 = vmatpush1.msra.mxu0 0.0
    %1060 = vmatprep.subr.mxu0 0.0
    %1061 = vmatpush1.msra.mxu0 0.0
    %1062 = vmatprep.subr.mxu0 0.0
    %1063 = vmatpush1.msra.mxu0 0.0
    %1064 = vmatprep.subr.mxu0 0.0
    %1065 = vmatpush1.msra.mxu0 0.0
    %1066 = vmatprep.subr.mxu0 0.0
    %1067 = vmatpush1.msra.mxu0 0.0
    %1068 = vmatprep.subr.mxu0 0.0
    %1069 = vmatpush1.msra.mxu0 0.0
    %1070 = vmatprep.subr.mxu0 0.0
    %1071 = vmatpush1.msra.mxu0 0.0
    %1072 = vmatprep.subr.mxu0 0.0
    %1073 = vmatpush1.msra.mxu0 0.0
    %1074 = vmatprep.subr.mxu0 0.0
    %1075 = vmatpush1.msra.mxu0 0.0
    %1076 = vmatprep.subr.mxu0 0.0
    %1077 = vmatpush1.msra.mxu0 0.0
    %1078 = vmatprep.subr.mxu0 0.0
    %1079 = vmatpush1.msra.mxu0 0.0
    %1080 = vmatprep.subr.mxu0 0.0
    %1081 = vmatpush1.msra.mxu0 0.0
    %1082 = vmatprep.subr.mxu0 0.0
    %1083 = vmatpush1.msra.mxu0 0.0
    %1084 = vmatprep.subr.mxu0 0.0
    %1085 = vmatpush1.msra.mxu0 0.0
    %1086 = vmatprep.subr.mxu0 0.0
    %1087 = vmatpush1.msra.mxu0 0.0
    %1088 = vmatprep.subr.mxu0 0.0
    %1089 = vmatpush1.msra.mxu0 0.0
    %1090 = vmatprep.subr.mxu0 0.0
    %1091 = vmatpush1.msra.mxu0 0.0
    %1092 = vmatprep.subr.mxu0 0.0
    %1093 = vmatpush1.msra.mxu0 0.0
    %1094 = vmatprep.subr.mxu0 0.0
    %1095 = vmatpush1.msra.mxu0 0.0
    %1096 = vmatprep.subr.mxu0 0.0
    %1097 = vmatpush1.msra.mxu0 0.0
    %1098 = vmatprep.subr.mxu0 0.0
    %1099 = vmatpush1.msra.mxu0 0.0
    %1100 = vmatprep.subr.mxu0 0.0
    %1101 = vmatpush1.msra.mxu0 0.0
    %1102 = vmatprep.subr.mxu0 0.0
    %1103 = vmatpush1.msra.mxu0 0.0
    %1104 = vmatprep.subr.mxu0 0.0
    %1105 = vmatpush1.msra.mxu0 0.0
    %1106 = vmatprep.subr.mxu0 0.0
    %1107 = vmatpush1.msra.mxu0 0.0
    %1108 = vmatprep.subr.mxu0 0.0
    %1109 = vmatpush1.msra.mxu0 0.0
    %1110 = vmatprep.subr.mxu0 0.0
    %1111 = vmatpush1.msra.mxu0 0.0
    %1112 = vmatprep.subr.mxu0 0.0
    %1113 = vmatpush1.msra.mxu0 0.0
    %1114 = vmatprep.mubr.f32.mxu0 0.0
    %1115 = vmatmul.mubr.f32.gmra.mrb[0].mxu0 %v1045
    %v1116 = vpop.f32.mrb[0].mxu0
    %v1117 = vadd.f32 0.0, %v1116
    %v1118 = vpop.f32.mrb[0].mxu0
    %1119 = vmatprep.mubr.f32.mxu0 0.0
    %1120 = vmatmul.mubr.f32.gmra.mrb[0].mxu0 %v1048
    %v1121 = vpop.f32.mrb[0].mxu0
    %v1122 = vadd.f32 0.0, %v1121
    %v1123 = vpop.f32.mrb[0].mxu0
    %1124 = vdwg.mxu0
    %v1125 = vadd.f32 %v913, %v1117
    %v1126 = vadd.f32 %v914, %v1122
    %v1127 = vlaneseq
    %v1128 = vshrl.u32 %v1127, 7
    %v1129 = vsub.s32 2, %v1128
    %v1130 = vrot.slane %v76, %v1129
    %v1131 = vadd.f32 %v1125, %v1130
    %v1132 = vadd.f32 %v1126, %v1130
    %v1133 = vadd.f32 %v54, %v1131
    %v1134 = vadd.f32 %v55, %v1132
    %v1135 = vsel %vm79, %v1133, 0.0
    %1136 = vadd.xlane.f32.xlu0 %v1135
    %v1137 = vpop.xlane.xlu0 %1136
    %v1138 = vsel %vm79, %v1134, 0.0
    %1139 = vadd.xlane.f32.xlu0 %v1138
    %v1140 = vpop.xlane.xlu0 %1139
    %v1141 = vmul.f32 %v1137, %v86
    %v1142 = vmul.f32 %v1140, %v86
    %v1143 = vsub.f32 %v1133, %v1141
    %v1144 = vsub.f32 %v1134, %v1142
    %v1145 = vmul.f32 %v1143, %v1143
    %v1146 = vmul.f32 %v1144, %v1144
    %v1147 = vsel %vm79, %v1145, 0.0
    %1148 = vadd.xlane.f32.xlu0 %v1147
    %v1149 = vpop.xlane.xlu0 %1148
    %v1150 = vsel %vm79, %v1146, 0.0
    %1151 = vadd.xlane.f32.xlu0 %v1150
    %v1152 = vpop.xlane.xlu0 %1151
    %v1153 = vmul.f32 %v1149, %v86
    %v1154 = vmul.f32 %v1152, %v86
    %v1155 = vadd.f32 %v1153, 1e-05
    %v1156 = vadd.f32 %v1154, 1e-05
    %v1157 = vrsqrt.pop %v1155
    %v1158 = vrsqrt.pop %v1156
    %v1159 = vmul.f32 %v1143, %v1157
    %v1160 = vmul.f32 %v1144, %v1158
    %v1161 = vlaneseq
    %v1162 = vshrl.u32 %v1161, 7
    %v1163 = vsub.s32 1, %v1162
    %v1164 = vrot.slane %v76, %v1163
    %v1166 = vsel %vm79, %v1159, 0
    %v1169 = vsel %vm79, %v1160, 0
    %1171 = vmatprep.subr.mxu0 0.0
    %1172 = vmatpush1.msra.mxu0 %v68
    %1173 = vmatprep.subr.mxu0 0.0
    %1174 = vmatpush1.msra.mxu0 %v70
    %1175 = vmatprep.subr.mxu0 0.0
    %1176 = vmatpush1.msra.mxu0 %v72
    %1177 = vmatprep.subr.mxu0 0.0
    %1178 = vmatpush1.msra.mxu0 %v74
    %1179 = vmatprep.subr.mxu0 0.0
    %1180 = vmatpush1.msra.mxu0 0.0
    %1181 = vmatprep.subr.mxu0 0.0
    %1182 = vmatpush1.msra.mxu0 0.0
    %1183 = vmatprep.subr.mxu0 0.0
    %1184 = vmatpush1.msra.mxu0 0.0
    %1185 = vmatprep.subr.mxu0 0.0
    %1186 = vmatpush1.msra.mxu0 0.0
    %1187 = vmatprep.subr.mxu0 0.0
    %1188 = vmatpush1.msra.mxu0 0.0
    %1189 = vmatprep.subr.mxu0 0.0
    %1190 = vmatpush1.msra.mxu0 0.0
    %1191 = vmatprep.subr.mxu0 0.0
    %1192 = vmatpush1.msra.mxu0 0.0
    %1193 = vmatprep.subr.mxu0 0.0
    %1194 = vmatpush1.msra.mxu0 0.0
    %1195 = vmatprep.subr.mxu0 0.0
    %1196 = vmatpush1.msra.mxu0 0.0
    %1197 = vmatprep.subr.mxu0 0.0
    %1198 = vmatpush1.msra.mxu0 0.0
    %1199 = vmatprep.subr.mxu0 0.0
    %1200 = vmatpush1.msra.mxu0 0.0
    %1201 = vmatprep.subr.mxu0 0.0
    %1202 = vmatpush1.msra.mxu0 0.0
    %1203 = vmatprep.subr.mxu0 0.0
    %1204 = vmatpush1.msra.mxu0 0.0
    %1205 = vmatprep.subr.mxu0 0.0
    %1206 = vmatpush1.msra.mxu0 0.0
    %1207 = vmatprep.subr.mxu0 0.0
    %1208 = vmatpush1.msra.mxu0 0.0
    %1209 = vmatprep.subr.mxu0 0.0
    %1210 = vmatpush1.msra.mxu0 0.0
    %1211 = vmatprep.subr.mxu0 0.0
    %1212 = vmatpush1.msra.mxu0 0.0
    %1213 = vmatprep.subr.mxu0 0.0
    %1214 = vmatpush1.msra.mxu0 0.0
    %1215 = vmatprep.subr.mxu0 0.0
    %1216 = vmatpush1.msra.mxu0 0.0
    %1217 = vmatprep.subr.mxu0 0.0
    %1218 = vmatpush1.msra.mxu0 0.0
    %1219 = vmatprep.subr.mxu0 0.0
    %1220 = vmatpush1.msra.mxu0 0.0
    %1221 = vmatprep.subr.mxu0 0.0
    %1222 = vmatpush1.msra.mxu0 0.0
    %1223 = vmatprep.subr.mxu0 0.0
    %1224 = vmatpush1.msra.mxu0 0.0
    %1225 = vmatprep.subr.mxu0 0.0
    %1226 = vmatpush1.msra.mxu0 0.0
    %1227 = vmatprep.subr.mxu0 0.0
    %1228 = vmatpush1.msra.mxu0 0.0
    %1229 = vmatprep.subr.mxu0 0.0
    %1230 = vmatpush1.msra.mxu0 0.0
    %1231 = vmatprep.subr.mxu0 0.0
    %1232 = vmatpush1.msra.mxu0 0.0
    %1233 = vmatprep.subr.mxu0 0.0
    %1234 = vmatpush1.msra.mxu0 0.0
    %1235 = vmatprep.mubr.f32.mxu0 0.0
    %1236 = vmatmul.mubr.f32.gmra.mrb[0].mxu0 %v1166
    %v1237 = vpop.f32.mrb[0].mxu0
    %v1238 = vadd.f32 %v1164, %v1237
    %v1239 = vpop.f32.mrb[0].mxu0
    %1240 = vmatprep.mubr.f32.mxu0 0.0
    %1241 = vmatmul.mubr.f32.gmra.mrb[0].mxu0 %v1169
    %v1242 = vpop.f32.mrb[0].mxu0
    %v1243 = vadd.f32 %v1164, %v1242
    %v1244 = vpop.f32.mrb[0].mxu0
    %1245 = vdwg.mxu0
    %v1246 = vmax.f32 %v1238, 0.0
    %v1247 = vmax.f32 %v1243, 0.0
    %v1248 = vlaneseq
    %v1249 = vshrl.u32 %v1248, 7
    %v1250 = vsub.s32 3, %v1249
    %v1251 = vrot.slane %v76, %v1250
    %1252 = vmatprep.subr.mxu0 0.0
    %1253 = vmatpush1.xpose.msra.mxu0 %v69
    %1254 = vmatprep.subr.mxu0 0.0
    %1255 = vmatpush1.xpose.msra.mxu0 %v71
    %1256 = vmatprep.subr.mxu0 0.0
    %1257 = vmatpush1.xpose.msra.mxu0 %v73
    %1258 = vmatprep.subr.mxu0 0.0
    %1259 = vmatpush1.xpose.msra.mxu0 %v75
    %1260 = vmatprep.subr.mxu0 0.0
    %1261 = vmatpush1.xpose.msra.mxu0 0.0
    %1262 = vmatprep.subr.mxu0 0.0
    %1263 = vmatpush1.xpose.msra.mxu0 0.0
    %1264 = vmatprep.subr.mxu0 0.0
    %1265 = vmatpush1.xpose.msra.mxu0 0.0
    %1266 = vmatprep.subr.mxu0 0.0
    %1267 = vmatpush1.xpose.msra.mxu0 0.0
    %1268 = vmatprep.subr.mxu0 0.0
    %1269 = vmatpush1.xpose.msra.mxu0 0.0
    %1270 = vmatprep.subr.mxu0 0.0
    %1271 = vmatpush1.xpose.msra.mxu0 0.0
    %1272 = vmatprep.subr.mxu0 0.0
    %1273 = vmatpush1.xpose.msra.mxu0 0.0
    %1274 = vmatprep.subr.mxu0 0.0
    %1275 = vmatpush1.xpose.msra.mxu0 0.0
    %1276 = vmatprep.subr.mxu0 0.0
    %1277 = vmatpush1.xpose.msra.mxu0 0.0
    %1278 = vmatprep.subr.mxu0 0.0
    %1279 = vmatpush1.xpose.msra.mxu0 0.0
    %1280 = vmatprep.subr.mxu0 0.0
    %1281 = vmatpush1.xpose.msra.mxu0 0.0
    %1282 = vmatprep.subr.mxu0 0.0
    %1283 = vmatpush1.xpose.msra.mxu0 0.0
    %1284 = vmatprep.subr.mxu0 0.0
    %1285 = vmatpush1.xpose.msra.mxu0 0.0
    %1286 = vmatprep.subr.mxu0 0.0
    %1287 = vmatpush1.xpose.msra.mxu0 0.0
    %1288 = vmatprep.subr.mxu0 0.0
    %1289 = vmatpush1.xpose.msra.mxu0 0.0
    %1290 = vmatprep.subr.mxu0 0.0
    %1291 = vmatpush1.xpose.msra.mxu0 0.0
    %1292 = vmatprep.subr.mxu0 0.0
    %1293 = vmatpush1.xpose.msra.mxu0 0.0
    %1294 = vmatprep.subr.mxu0 0.0
    %1295 = vmatpush1.xpose.msra.mxu0 0.0
    %1296 = vmatprep.subr.mxu0 0.0
    %1297 = vmatpush1.xpose.msra.mxu0 0.0
    %1298 = vmatprep.subr.mxu0 0.0
    %1299 = vmatpush1.xpose.msra.mxu0 0.0
    %1300 = vmatprep.subr.mxu0 0.0
    %1301 = vmatpush1.xpose.msra.mxu0 0.0
    %1302 = vmatprep.subr.mxu0 0.0
    %1303 = vmatpush1.xpose.msra.mxu0 0.0
    %1304 = vmatprep.subr.mxu0 0.0
    %1305 = vmatpush1.xpose.msra.mxu0 0.0
    %1306 = vmatprep.subr.mxu0 0.0
    %1307 = vmatpush1.xpose.msra.mxu0 0.0
    %1308 = vmatprep.subr.mxu0 0.0
    %1309 = vmatpush1.xpose.msra.mxu0 0.0
    %1310 = vmatprep.subr.mxu0 0.0
    %1311 = vmatpush1.xpose.msra.mxu0 0.0
    %1312 = vmatprep.subr.mxu0 0.0
    %1313 = vmatpush1.xpose.msra.mxu0 0.0
    %1314 = vmatprep.subr.mxu0 0.0
    %1315 = vmatpush1.xpose.msra.mxu0 0.0
    %1316 = vmatprep.mubr.f32.mxu0 0.0
    %1317 = vmatmul.mubr.f32.gmra.mrb[0].mxu0 %v1246
    %v1318 = vpop.f32.mrb[0].mxu0
    %v1319 = vadd.f32 %v1251, %v1318
    %v1320 = vpop.f32.mrb[0].mxu0
    %1321 = vmatprep.mubr.f32.mxu0 0.0
    %1322 = vmatmul.mubr.f32.gmra.mrb[0].mxu0 %v1247
    %v1323 = vpop.f32.mrb[0].mxu0
    %v1324 = vadd.f32 %v1251, %v1323
    %v1325 = vpop.f32.mrb[0].mxu0
    %1326 = vdwg.mxu0
    %v1327 = vadd.f32 %v1133, %v1319
    %v1328 = vadd.f32 %v1134, %v1324
    %1329 = vst.msk [vmem:[#allocation8] sm:$0xff] %vm79, %v1327
    %1330 = vst.msk [vmem:[#allocation8 + $0x8] sm:$0xff] %vm79, %v1328
    // Predicated region
    $region26: #{run.1} parent=1 // pred_check
      _
    $region27: #{run.1} parent=1 // pred_check_branch
      %1332 = sbr.rel (0) target = $region29
    $region28: #{run.1} parent=1 // pred_region
      %s1334 = ssub.s32 256, 256
      %1335 = vsyncadd [#allocation4], %s1334
      %s1336 = sshll.u32 [#allocation8], 4
      %s1337 = int_to_ptr.vmem [resolvable:$true] %s1336
      %1342 = dma.vmem_to_hbm [thread:$0]  %s1337, 256, %s3, [#allocation4], 128, 128, 8
    $region29: #{run.1} parent=1 // pred_fallthru
      _
    // Predicated region
    $region30: #{run.1} parent=1 // pred_check
      _
    $region31: #{run.1} parent=1 // pred_check_branch
      %1344 = sbr.rel (0) target = $region33
    $region32: #{run.1} parent=1 // pred_region
      %1345 = dma.done [#allocation4], 256
    $region33: #{run.1} parent=1 // pred_fallthru
      _
    %1346 = vsyncpa [#allocation3], 1
    %1347 = vsyncpa [#allocation6], 1
    %1348 = vsyncpa [#allocation4], 1

</llo_original>
